<compile_context>
chip_gen: v7x
topology: tpu7x:2x2x1
jax: 0.10.0
libtpu: 0.0.40
codegen_flags: <defaults>
</compile_context>

<pallas_src>
import jax
import jax.numpy as jnp
from jax import lax
from jax.experimental import pallas as pl
from jax.experimental.pallas import tpu as pltpu

# -------------------- model dimensions --------------------
MAX_SEQ_LEN = 7            # settings.max_sequence_length
EMB_SIZE = 32              # settings.embedding_size
SEQ = MAX_SEQ_LEN + 1      # 8
D_IN = SEQ * EMB_SIZE      # 256
H1 = 1500                  # fc1 out (unpadded)
H1_PAD = 1536              # 12 * 128
H2 = 128                   # fc2 out
N_DESC = 266               # descriptor width (unpadded)
N_DESC_PAD = 384           # 3 * 128
N_LN = H2 + N_DESC         # 394 (true LayerNorm width / divisor)
HF1 = 128                  # mini_HF hidden 1
HF2 = 32                   # mini_HF hidden 2
LN_EPS = 1e-5

# rows of the packed (7, 128) parameter table
_R_B2, _R_GX, _R_BX, _R_BH1, _R_BH2, _R_WH3, _R_BH3 = range(7)
# rows of the packed (3, 384) parameter table
_R_GD, _R_BD, _R_DMASK = range(3)


# -------------------- Pallas kernel --------------------
def multi_fidelity_kernel(mem_ref, desc_ref, w1_ref, b1_ref, w2_ref,
                          vec128_ref, vec384_ref,
                          wh1x_ref, wh1d_ref, wh2_ref, out_ref):
    f32 = jnp.float32
    bf16 = jnp.bfloat16

    # packed parameter vectors (static slices -> cheap views)
    b2 = vec128_ref[_R_B2:_R_B2 + 1, :]
    gx = vec128_ref[_R_GX:_R_GX + 1, :]
    bx = vec128_ref[_R_BX:_R_BX + 1, :]
    bh1 = vec128_ref[_R_BH1:_R_BH1 + 1, :]
    bh2 = vec128_ref[_R_BH2:_R_BH2 + 1, :HF2]
    wh3 = vec128_ref[_R_WH3:_R_WH3 + 1, :HF2]
    bh3 = vec128_ref[_R_BH3:_R_BH3 + 1, 0:1]
    gd = vec384_ref[_R_GD:_R_GD + 1, :]
    bd = vec384_ref[_R_BD:_R_BD + 1, :]
    dmask = vec384_ref[_R_DMASK:_R_DMASK + 1, :]

    # fc1 + ReLU  (dropout p=0.5 -> identity in eval).  bf16 MXU, f32 accumulate.
    x = jnp.dot(mem_ref[...], w1_ref[...],
                preferred_element_type=f32) + b1_ref[...]
    x = jnp.maximum(x, 0.0).astype(bf16)               # (TB, 1536); padded cols are 0

    # fc2 + ReLU  (dropout identity)
    x = jnp.dot(x, w2_ref[...], preferred_element_type=f32) + b2
    x = jnp.maximum(x, 0.0)                             # (TB, 128) f32

    d = desc_ref[...]                                   # (TB, 384) f32, lanes >=266 are 0

    # LayerNorm over the (virtual) concat [x, d] of true width 394, two-pass variance.
    inv_n = jnp.float32(1.0 / N_LN)
    mean = (jnp.sum(x, axis=-1, keepdims=True)
            + jnp.sum(d, axis=-1, keepdims=True)) * inv_n
    x_c = x - mean
    d_c = (d - mean) * dmask                            # padded lanes contribute 0
    var = (jnp.sum(x_c * x_c, axis=-1, keepdims=True)
           + jnp.sum(d_c * d_c, axis=-1, keepdims=True)) * inv_n
    inv = lax.rsqrt(var + LN_EPS)
    xn = x_c * inv * gx + bx                            # (TB, 128)
    dn = d_c * inv * gd + bd                            # (TB, 384), padded lanes -> 0

    # mini_HF head: virtual concat via two accumulated bf16 matmuls (no scratch).
    h = (jnp.dot(xn.astype(bf16), wh1x_ref[...], preferred_element_type=f32)
         + jnp.dot(dn.astype(bf16), wh1d_ref[...], preferred_element_type=f32)
         + bh1)
    h = jnp.maximum(h, 0.0)                             # (TB, 128)

    h = jnp.dot(h.astype(bf16), wh2_ref[...], preferred_element_type=f32) + bh2
    h = jnp.maximum(h, 0.0)                             # (TB, 32)

    # final 32 -> 1 projection as a lane reduction (avoid degenerate N=1 matmul);
    # narrow (TB, 1) writeback keeps HBM writes 128x smaller than a broadcast slab.
    out = jnp.sum(h * wh3, axis=-1, keepdims=True) + bh3   # (TB, 1)
    out_ref[...] = out.astype(out_ref.dtype)


# -------------------- host wrapper --------------------
def _round_up(x, m):
    return ((x + m - 1) // m) * m


def _pick_tb(B):
    if B <= 128:
        return _round_up(max(B, 1), 8)        # single full-array tile (grid = 1)
    # large B: tiles of up to 512 rows, grid kept >= 2 so v7x can shard across its 2 TCs
    half = _round_up(-(-B // 2), 128)
    return min(512, half)


def _pad_row(v, n, dtype=jnp.float32):
    v = jnp.asarray(v).reshape(1, -1).astype(dtype)
    return jnp.pad(v, ((0, 0), (0, n - v.shape[1])))


def multi_fidelity_forward(memory_, descriptors, params, *, tb=None):
    """memory_: (B, SEQ, EMB_SIZE), descriptors: (B, 266) -> (B, 1)."""
    f32 = jnp.float32
    bf16 = jnp.bfloat16
    B = memory_.shape[0]

    if tb is None:
        tb = _pick_tb(B)
    b_pad = _round_up(B, tb)

    # --- activations: flatten, zero-pad batch rows; memory stream in bf16 ---
    mem = jnp.pad(memory_.reshape(B, D_IN).astype(f32),
                  ((0, b_pad - B), (0, 0))).astype(bf16)
    desc = jnp.pad(descriptors.reshape(B, N_DESC).astype(f32),
                   ((0, b_pad - B), (0, N_DESC_PAD - N_DESC)))

    # --- weights: lane-dense zero padding; matmul operands in bf16 ---
    w1 = jnp.pad(params["w1"], ((0, 0), (0, H1_PAD - H1))).astype(bf16)       # (256, 1536)
    b1 = _pad_row(params["b1"], H1_PAD)                                       # (1, 1536)
    w2 = jnp.pad(params["w2"], ((0, H1_PAD - H1), (0, 0))).astype(bf16)       # (1536, 128)

    # head first layer split into x-part / descriptor-part (zero-padded rows past 266)
    wh1x = params["wh1"][:H2].astype(bf16)                                    # (128, 128)
    wh1d = jnp.pad(params["wh1"][H2:],
                   ((0, N_DESC_PAD - N_DESC), (0, 0))).astype(bf16)           # (384, 128)
    wh2 = params["wh2"].astype(bf16)                                          # (128, 32)

    # packed parameter-vector tables
    vec128 = jnp.concatenate([
        _pad_row(params["b2"], 128),
        _pad_row(params["ln_g"][:H2], 128),
        _pad_row(params["ln_b"][:H2], 128),
        _pad_row(params["bh1"], 128),
        _pad_row(params["bh2"], 128),
        _pad_row(params["wh3"], 128),
        _pad_row(params["bh3"], 128),
    ], axis=0)                                                                # (7, 128)
    vec384 = jnp.concatenate([
        _pad_row(params["ln_g"][H2:], N_DESC_PAD),       # zero-padded gamma
        _pad_row(params["ln_b"][H2:], N_DESC_PAD),       # zero-padded beta
        _pad_row(jnp.ones((N_DESC,), f32), N_DESC_PAD),  # LN variance mask
    ], axis=0)                                                                # (3, 384)

    grid = (b_pad // tb,)
    row = lambda i: (i, 0)        # batch-tiled activations / output
    const = lambda i: (0, 0)      # weights: DMA once, stay VMEM-resident

    in_specs = [
        pl.BlockSpec((tb, D_IN), row),           # mem (bf16)
        pl.BlockSpec((tb, N_DESC_PAD), row),     # descriptors (f32)
        pl.BlockSpec((D_IN, H1_PAD), const),     # w1
        pl.BlockSpec((1, H1_PAD), const),        # b1
        pl.BlockSpec((H1_PAD, H2), const),       # w2
        pl.BlockSpec((7, 128), const),           # packed 128-wide vectors
        pl.BlockSpec((3, N_DESC_PAD), const),    # packed 384-wide vectors
        pl.BlockSpec((H2, HF1), const),          # wh1 (x part)
        pl.BlockSpec((N_DESC_PAD, HF1), const),  # wh1 (descriptor part)
        pl.BlockSpec((HF1, HF2), const),         # wh2
    ]
    out_spec = pl.BlockSpec((tb, 1), row)

    flops = 2 * b_pad * (D_IN * H1_PAD + H1_PAD * H2
                         + (H2 + N_DESC_PAD) * HF1 + HF1 * HF2 + HF2)
    weight_bytes = (D_IN * H1_PAD + H1_PAD * H2
                    + (H2 + N_DESC_PAD) * HF1 + HF1 * HF2) * 2 + (7 + 3) * 512 * 4
    act_bytes = b_pad * (D_IN * 2 + N_DESC_PAD * 4 + 4)
    cost = pl.CostEstimate(flops=flops, transcendentals=b_pad,
                           bytes_accessed=weight_bytes + act_bytes)

    out = pl.pallas_call(
        multi_fidelity_kernel,
        out_shape=jax.ShapeDtypeStruct((b_pad, 1), f32),
        grid_spec=pltpu.PrefetchScalarGridSpec(
            num_scalar_prefetch=0,
            grid=grid,
            in_specs=in_specs,
            out_specs=out_spec),
        compiler_params=pltpu.CompilerParams(
            dimension_semantics=("parallel",),
            vmem_limit_bytes=32 * 1024 * 1024),
        cost_estimate=cost,
    )(mem, desc, w1, b1, w2, vec128, vec384, wh1x, wh1d, wh2)

    return out[:B]


# -------------------- deterministic parameter init (unpadded, f32) --------------------
def init_params(key):
    ks = jax.random.split(key, 10)

    def w(k, shape, scale=0.02):
        return (scale * jax.random.normal(k, shape)).astype(jnp.float32)

    return {
        "w1": w(ks[0], (D_IN, H1)),
        "b1": w(ks[1], (H1,)),
        "w2": w(ks[2], (H1, H2)),
        "b2": w(ks[3], (H2,)),
        "ln_g": jnp.ones((N_LN,), jnp.float32),
        "ln_b": jnp.zeros((N_LN,), jnp.float32),
        # TODO(synk): mini_HF definition not given in source; assumed 394->128->32->1 ReLU MLP.
        "wh1": w(ks[4], (N_LN, HF1)),
        "bh1": w(ks[5], (HF1,)),
        "wh2": w(ks[6], (HF1, HF2)),
        "bh2": w(ks[7], (HF2,)),
        "wh3": w(ks[8], (HF2,)),
        "bh3": w(ks[9], (1,)),
    }


# -------------------- pure-JAX reference (mirrors the bf16 quantization) --------------------
def reference_forward(memory_, descriptors, p):
    f32, bf16 = jnp.float32, jnp.bfloat16
    hp = jax.lax.Precision.HIGHEST
    q = lambda a: a.astype(bf16).astype(f32)
    B = memory_.shape[0]

    mem = q(memory_.reshape(B, D_IN).astype(f32))
    x = jnp.maximum(jnp.dot(mem, q(p["w1"]), precision=hp) + p["b1"][None, :], 0.0)
    x = jnp.maximum(jnp.dot(q(x), q(p["w2"]), precision=hp) + p["b2"][None, :], 0.0)

    cat = jnp.concatenate([x, descriptors.reshape(B, N_DESC).astype(f32)], axis=1)
    mean = cat.mean(-1, keepdims=True)
    var = ((cat - mean) ** 2).mean(-1, keepdims=True)
    cat = (cat - mean) / jnp.sqrt(var + LN_EPS) * p["ln_g"] + p["ln_b"]

    h = jnp.maximum(jnp.dot(q(cat), q(p["wh1"]), precision=hp) + p["bh1"][None, :], 0.0)
    h = jnp.maximum(jnp.dot(q(h), q(p["wh2"]), precision=hp) + p["bh2"][None, :], 0.0)
    return jnp.dot(h, p["wh3"].reshape(HF2, 1), precision=hp) + p["bh3"].reshape(1, 1)


# -------------------- main --------------------
if __name__ == "__main__":
    key = jax.random.PRNGKey(0)
    k_mem, k_desc, k_param = jax.random.split(key, 3)
    params = init_params(k_param)

    # small demo shapes (B=2) -> single small tile (grid = 1)
    B = 2
    memory_ = jax.random.normal(k_mem, (B, SEQ, EMB_SIZE), jnp.float32)
    descriptors = jax.random.normal(k_desc, (B, N_DESC), jnp.float32)

    out = multi_fidelity_forward(memory_, descriptors, params)
    out = jax.block_until_ready(out)
    ref = reference_forward(memory_, descriptors, params)
    assert out.shape == (B, 1)
    assert jnp.allclose(out, ref, atol=5e-4, rtol=5e-3), (out, ref)

    # larger batch -> exercises the multi-tile batch grid (tb=128, grid=2)
    B2 = 200
    k_mem2, k_desc2 = jax.random.split(jax.random.PRNGKey(1), 2)
    memory2 = jax.random.normal(k_mem2, (B2, SEQ, EMB_SIZE), jnp.float32)
    descriptors2 = jax.random.normal(k_desc2, (B2, N_DESC), jnp.float32)
    out2 = jax.block_until_ready(multi_fidelity_forward(memory2, descriptors2, params))
    ref2 = reference_forward(memory2, descriptors2, params)
    assert out2.shape == (B2, 1)
    assert jnp.allclose(out2, ref2, atol=5e-4, rtol=5e-3), (out2, ref2)

    print("KERNEL_OK")
</pallas_src>

<mosaic_0001>
module attributes {stable_mosaic.version = 11 : i64} {
  func.func @multi_fidelity_kernel(%arg0: i32, %arg1: memref<8x256xbf16, #tpu.memory_space<vmem>>, %arg2: memref<8x384xf32, #tpu.memory_space<vmem>>, %arg3: memref<256x1536xbf16, #tpu.memory_space<vmem>>, %arg4: memref<1x1536xf32, #tpu.memory_space<vmem>>, %arg5: memref<1536x128xbf16, #tpu.memory_space<vmem>>, %arg6: memref<7x128xf32, #tpu.memory_space<vmem>>, %arg7: memref<3x384xf32, #tpu.memory_space<vmem>>, %arg8: memref<128x128xbf16, #tpu.memory_space<vmem>>, %arg9: memref<384x128xbf16, #tpu.memory_space<vmem>>, %arg10: memref<128x32xbf16, #tpu.memory_space<vmem>>, %arg11: memref<8x1xf32, #tpu.memory_space<vmem>>) attributes {dimension_semantics = [#tpu.dimension_semantics<parallel>], iteration_bounds = array<i64: 1>, scalar_prefetch = 0 : i64, scratch_operands = 0 : i64, tpu.core_type = #tpu.core_type<tc>, window_params = [{transform_indices = @transform_0, window_bounds = array<i64: 8, 256>}, {transform_indices = @transform_1, window_bounds = array<i64: 8, 384>}, {pipeline_mode = #tpu.pipeline_mode<synchronous>, transform_indices = @transform_2, window_bounds = array<i64: 256, 1536>}, {pipeline_mode = #tpu.pipeline_mode<synchronous>, transform_indices = @transform_3, window_bounds = array<i64: 1, 1536>}, {pipeline_mode = #tpu.pipeline_mode<synchronous>, transform_indices = @transform_4, window_bounds = array<i64: 1536, 128>}, {pipeline_mode = #tpu.pipeline_mode<synchronous>, transform_indices = @transform_5, window_bounds = array<i64: 7, 128>}, {pipeline_mode = #tpu.pipeline_mode<synchronous>, transform_indices = @transform_6, window_bounds = array<i64: 3, 384>}, {pipeline_mode = #tpu.pipeline_mode<synchronous>, transform_indices = @transform_7, window_bounds = array<i64: 128, 128>}, {pipeline_mode = #tpu.pipeline_mode<synchronous>, transform_indices = @transform_8, window_bounds = array<i64: 384, 128>}, {pipeline_mode = #tpu.pipeline_mode<synchronous>, transform_indices = @transform_9, window_bounds = array<i64: 128, 32>}, {transform_indices = @transform_10, window_bounds = array<i64: 8, 1>}]} {
    %c0 = arith.constant 0 : index
    %c0_0 = arith.constant 0 : index
    %0 = vector.load %arg6[%c0, %c0_0] : memref<7x128xf32, #tpu.memory_space<vmem>>, vector<1x128xf32>
    %c1 = arith.constant 1 : index
    %c0_1 = arith.constant 0 : index
    %1 = vector.load %arg6[%c1, %c0_1] : memref<7x128xf32, #tpu.memory_space<vmem>>, vector<1x128xf32>
    %c2 = arith.constant 2 : index
    %c0_2 = arith.constant 0 : index
    %2 = vector.load %arg6[%c2, %c0_2] : memref<7x128xf32, #tpu.memory_space<vmem>>, vector<1x128xf32>
    %c3 = arith.constant 3 : index
    %c0_3 = arith.constant 0 : index
    %3 = vector.load %arg6[%c3, %c0_3] : memref<7x128xf32, #tpu.memory_space<vmem>>, vector<1x128xf32>
    %c4 = arith.constant 4 : index
    %c0_4 = arith.constant 0 : index
    %4 = vector.load %arg6[%c4, %c0_4] : memref<7x128xf32, #tpu.memory_space<vmem>>, vector<1x32xf32>
    %c5 = arith.constant 5 : index
    %c0_5 = arith.constant 0 : index
    %5 = vector.load %arg6[%c5, %c0_5] : memref<7x128xf32, #tpu.memory_space<vmem>>, vector<1x32xf32>
    %c6 = arith.constant 6 : index
    %c0_6 = arith.constant 0 : index
    %6 = vector.load %arg6[%c6, %c0_6] : memref<7x128xf32, #tpu.memory_space<vmem>>, vector<1x1xf32>
    %c0_7 = arith.constant 0 : index
    %c0_8 = arith.constant 0 : index
    %7 = vector.load %arg7[%c0_7, %c0_8] : memref<3x384xf32, #tpu.memory_space<vmem>>, vector<1x384xf32>
    %c1_9 = arith.constant 1 : index
    %c0_10 = arith.constant 0 : index
    %8 = vector.load %arg7[%c1_9, %c0_10] : memref<3x384xf32, #tpu.memory_space<vmem>>, vector<1x384xf32>
    %c2_11 = arith.constant 2 : index
    %c0_12 = arith.constant 0 : index
    %9 = vector.load %arg7[%c2_11, %c0_12] : memref<3x384xf32, #tpu.memory_space<vmem>>, vector<1x384xf32>
    %c0_13 = arith.constant 0 : index
    %c0_14 = arith.constant 0 : index
    %10 = vector.load %arg1[%c0_13, %c0_14] : memref<8x256xbf16, #tpu.memory_space<vmem>>, vector<8x256xbf16>
    %c0_15 = arith.constant 0 : index
    %c0_16 = arith.constant 0 : index
    %11 = vector.load %arg3[%c0_15, %c0_16] : memref<256x1536xbf16, #tpu.memory_space<vmem>>, vector<256x1536xbf16>
    %cst = arith.constant dense<0.000000e+00> : vector<8x1536xf32>
    %12 = tpu.matmul %10, %11, %cst {dimension_numbers = #tpu.dot_dimension_numbers<[1], [0], [0], [1], [0, 0, 1, 1], [], []>} : vector<8x256xbf16>, vector<256x1536xbf16>, vector<8x1536xf32> -> vector<8x1536xf32>
    %c0_17 = arith.constant 0 : index
    %c0_18 = arith.constant 0 : index
    %13 = vector.load %arg4[%c0_17, %c0_18] : memref<1x1536xf32, #tpu.memory_space<vmem>>, vector<1x1536xf32>
    %14 = vector.broadcast %13 : vector<1x1536xf32> to vector<8x1536xf32>
    %15 = arith.addf %12, %14 : vector<8x1536xf32>
    %cst_19 = arith.constant 0.000000e+00 : f32
    %16 = vector.broadcast %cst_19 : f32 to vector<8x1536xf32>
    %17 = arith.maximumf %15, %16 : vector<8x1536xf32>
    %18 = arith.truncf %17 : vector<8x1536xf32> to vector<8x1536xbf16>
    %c0_20 = arith.constant 0 : index
    %c0_21 = arith.constant 0 : index
    %19 = vector.load %arg5[%c0_20, %c0_21] : memref<1536x128xbf16, #tpu.memory_space<vmem>>, vector<1536x128xbf16>
    %cst_22 = arith.constant dense<0.000000e+00> : vector<8x128xf32>
    %20 = tpu.matmul %18, %19, %cst_22 {dimension_numbers = #tpu.dot_dimension_numbers<[1], [0], [0], [1], [0, 0, 1, 1], [], []>} : vector<8x1536xbf16>, vector<1536x128xbf16>, vector<8x128xf32> -> vector<8x128xf32>
    %21 = vector.broadcast %0 : vector<1x128xf32> to vector<8x128xf32>
    %22 = arith.addf %20, %21 : vector<8x128xf32>
    %cst_23 = arith.constant 0.000000e+00 : f32
    %23 = vector.broadcast %cst_23 : f32 to vector<8x128xf32>
    %24 = arith.maximumf %22, %23 : vector<8x128xf32>
    %c0_24 = arith.constant 0 : index
    %c0_25 = arith.constant 0 : index
    %25 = vector.load %arg2[%c0_24, %c0_25] : memref<8x384xf32, #tpu.memory_space<vmem>>, vector<8x384xf32>
    %cst_26 = arith.constant dense<0.000000e+00> : vector<8xf32>
    %26 = vector.multi_reduction <add>, %24, %cst_26 [1] : vector<8x128xf32> to vector<8xf32>
    %27 = vector.shape_cast %26 : vector<8xf32> to vector<8x1xf32>
    %cst_27 = arith.constant dense<0.000000e+00> : vector<8xf32>
    %28 = vector.multi_reduction <add>, %25, %cst_27 [1] : vector<8x384xf32> to vector<8xf32>
    %29 = vector.shape_cast %28 : vector<8xf32> to vector<8x1xf32>
    %30 = arith.addf %27, %29 : vector<8x1xf32>
    %cst_28 = arith.constant 0.00253807101 : f32
    %31 = vector.broadcast %cst_28 : f32 to vector<8x1xf32>
    %32 = arith.mulf %30, %31 : vector<8x1xf32>
    %33 = vector.broadcast %32 : vector<8x1xf32> to vector<8x128xf32>
    %34 = arith.subf %24, %33 : vector<8x128xf32>
    %35 = vector.broadcast %32 : vector<8x1xf32> to vector<8x384xf32>
    %36 = arith.subf %25, %35 : vector<8x384xf32>
    %37 = vector.broadcast %9 : vector<1x384xf32> to vector<8x384xf32>
    %38 = arith.mulf %36, %37 : vector<8x384xf32>
    %39 = arith.mulf %34, %34 : vector<8x128xf32>
    %cst_29 = arith.constant dense<0.000000e+00> : vector<8xf32>
    %40 = vector.multi_reduction <add>, %39, %cst_29 [1] : vector<8x128xf32> to vector<8xf32>
    %41 = vector.shape_cast %40 : vector<8xf32> to vector<8x1xf32>
    %42 = arith.mulf %38, %38 : vector<8x384xf32>
    %cst_30 = arith.constant dense<0.000000e+00> : vector<8xf32>
    %43 = vector.multi_reduction <add>, %42, %cst_30 [1] : vector<8x384xf32> to vector<8xf32>
    %44 = vector.shape_cast %43 : vector<8xf32> to vector<8x1xf32>
    %45 = arith.addf %41, %44 : vector<8x1xf32>
    %cst_31 = arith.constant 0.00253807101 : f32
    %46 = vector.broadcast %cst_31 : f32 to vector<8x1xf32>
    %47 = arith.mulf %45, %46 : vector<8x1xf32>
    %cst_32 = arith.constant 9.99999974E-6 : f32
    %48 = vector.broadcast %cst_32 : f32 to vector<8x1xf32>
    %49 = arith.addf %47, %48 : vector<8x1xf32>
    %50 = math.rsqrt %49 : vector<8x1xf32>
    %51 = vector.broadcast %50 : vector<8x1xf32> to vector<8x128xf32>
    %52 = arith.mulf %34, %51 : vector<8x128xf32>
    %53 = vector.broadcast %1 : vector<1x128xf32> to vector<8x128xf32>
    %54 = arith.mulf %52, %53 : vector<8x128xf32>
    %55 = vector.broadcast %2 : vector<1x128xf32> to vector<8x128xf32>
    %56 = arith.addf %54, %55 : vector<8x128xf32>
    %57 = vector.broadcast %50 : vector<8x1xf32> to vector<8x384xf32>
    %58 = arith.mulf %38, %57 : vector<8x384xf32>
    %59 = vector.broadcast %7 : vector<1x384xf32> to vector<8x384xf32>
    %60 = arith.mulf %58, %59 : vector<8x384xf32>
    %61 = vector.broadcast %8 : vector<1x384xf32> to vector<8x384xf32>
    %62 = arith.addf %60, %61 : vector<8x384xf32>
    %63 = arith.truncf %56 : vector<8x128xf32> to vector<8x128xbf16>
    %c0_33 = arith.constant 0 : index
    %c0_34 = arith.constant 0 : index
    %64 = vector.load %arg8[%c0_33, %c0_34] : memref<128x128xbf16, #tpu.memory_space<vmem>>, vector<128x128xbf16>
    %cst_35 = arith.constant dense<0.000000e+00> : vector<8x128xf32>
    %65 = tpu.matmul %63, %64, %cst_35 {dimension_numbers = #tpu.dot_dimension_numbers<[1], [0], [0], [1], [0, 0, 1, 1], [], []>} : vector<8x128xbf16>, vector<128x128xbf16>, vector<8x128xf32> -> vector<8x128xf32>
    %66 = arith.truncf %62 : vector<8x384xf32> to vector<8x384xbf16>
    %c0_36 = arith.constant 0 : index
    %c0_37 = arith.constant 0 : index
    %67 = vector.load %arg9[%c0_36, %c0_37] : memref<384x128xbf16, #tpu.memory_space<vmem>>, vector<384x128xbf16>
    %cst_38 = arith.constant dense<0.000000e+00> : vector<8x128xf32>
    %68 = tpu.matmul %66, %67, %cst_38 {dimension_numbers = #tpu.dot_dimension_numbers<[1], [0], [0], [1], [0, 0, 1, 1], [], []>} : vector<8x384xbf16>, vector<384x128xbf16>, vector<8x128xf32> -> vector<8x128xf32>
    %69 = arith.addf %65, %68 : vector<8x128xf32>
    %70 = vector.broadcast %3 : vector<1x128xf32> to vector<8x128xf32>
    %71 = arith.addf %69, %70 : vector<8x128xf32>
    %cst_39 = arith.constant 0.000000e+00 : f32
    %72 = vector.broadcast %cst_39 : f32 to vector<8x128xf32>
    %73 = arith.maximumf %71, %72 : vector<8x128xf32>
    %74 = arith.truncf %73 : vector<8x128xf32> to vector<8x128xbf16>
    %c0_40 = arith.constant 0 : index
    %c0_41 = arith.constant 0 : index
    %75 = vector.load %arg10[%c0_40, %c0_41] : memref<128x32xbf16, #tpu.memory_space<vmem>>, vector<128x32xbf16>
    %cst_42 = arith.constant dense<0.000000e+00> : vector<8x32xf32>
    %76 = tpu.matmul %74, %75, %cst_42 {dimension_numbers = #tpu.dot_dimension_numbers<[1], [0], [0], [1], [0, 0, 1, 1], [], []>} : vector<8x128xbf16>, vector<128x32xbf16>, vector<8x32xf32> -> vector<8x32xf32>
    %77 = vector.broadcast %4 : vector<1x32xf32> to vector<8x32xf32>
    %78 = arith.addf %76, %77 : vector<8x32xf32>
    %cst_43 = arith.constant 0.000000e+00 : f32
    %79 = vector.broadcast %cst_43 : f32 to vector<8x32xf32>
    %80 = arith.maximumf %78, %79 : vector<8x32xf32>
    %81 = vector.broadcast %5 : vector<1x32xf32> to vector<8x32xf32>
    %82 = arith.mulf %80, %81 : vector<8x32xf32>
    %cst_44 = arith.constant dense<0.000000e+00> : vector<8xf32>
    %83 = vector.multi_reduction <add>, %82, %cst_44 [1] : vector<8x32xf32> to vector<8xf32>
    %84 = vector.shape_cast %83 : vector<8xf32> to vector<8x1xf32>
    %85 = vector.broadcast %6 : vector<1x1xf32> to vector<8x1xf32>
    %86 = arith.addf %84, %85 : vector<8x1xf32>
    %c0_45 = arith.constant 0 : index
    %c0_46 = arith.constant 0 : index
    %87 = vector.load %arg11[%c0_45, %c0_46] : memref<8x1xf32, #tpu.memory_space<vmem>>, vector<8x1xf32>
    tpu.vector_store %arg11[%c0_45, %c0_46], %86 {strides = array<i32>} : memref<8x1xf32, #tpu.memory_space<vmem>>, vector<8x1xf32>,
    return
  }
  func.func @transform_0(%arg0: i32) -> (i32, i32) {
    %c0_i32 = arith.constant 0 : i32
    %c0_i32_0 = arith.constant 0 : i32
    return %arg0, %c0_i32 : i32, i32
  }
  func.func @transform_1(%arg0: i32) -> (i32, i32) {
    %c0_i32 = arith.constant 0 : i32
    %c0_i32_0 = arith.constant 0 : i32
    return %arg0, %c0_i32 : i32, i32
  }
  func.func @transform_2(%arg0: i32) -> (i32, i32) {
    %c0_i32 = arith.constant 0 : i32
    %c0_i32_0 = arith.constant 0 : i32
    %c0_i32_1 = arith.constant 0 : i32
    return %c0_i32, %c0_i32_0 : i32, i32
  }
  func.func @transform_3(%arg0: i32) -> (i32, i32) {
    %c0_i32 = arith.constant 0 : i32
    %c0_i32_0 = arith.constant 0 : i32
    %c0_i32_1 = arith.constant 0 : i32
    return %c0_i32, %c0_i32_0 : i32, i32
  }
  func.func @transform_4(%arg0: i32) -> (i32, i32) {
    %c0_i32 = arith.constant 0 : i32
    %c0_i32_0 = arith.constant 0 : i32
    %c0_i32_1 = arith.constant 0 : i32
    return %c0_i32, %c0_i32_0 : i32, i32
  }
  func.func @transform_5(%arg0: i32) -> (i32, i32) {
    %c0_i32 = arith.constant 0 : i32
    %c0_i32_0 = arith.constant 0 : i32
    %c0_i32_1 = arith.constant 0 : i32
    return %c0_i32, %c0_i32_0 : i32, i32
  }
  func.func @transform_6(%arg0: i32) -> (i32, i32) {
    %c0_i32 = arith.constant 0 : i32
    %c0_i32_0 = arith.constant 0 : i32
    %c0_i32_1 = arith.constant 0 : i32
    return %c0_i32, %c0_i32_0 : i32, i32
  }
  func.func @transform_7(%arg0: i32) -> (i32, i32) {
    %c0_i32 = arith.constant 0 : i32
    %c0_i32_0 = arith.constant 0 : i32
    %c0_i32_1 = arith.constant 0 : i32
    return %c0_i32, %c0_i32_0 : i32, i32
  }
  func.func @transform_8(%arg0: i32) -> (i32, i32) {
    %c0_i32 = arith.constant 0 : i32
    %c0_i32_0 = arith.constant 0 : i32
    %c0_i32_1 = arith.constant 0 : i32
    return %c0_i32, %c0_i32_0 : i32, i32
  }
  func.func @transform_9(%arg0: i32) -> (i32, i32) {
    %c0_i32 = arith.constant 0 : i32
    %c0_i32_0 = arith.constant 0 : i32
    %c0_i32_1 = arith.constant 0 : i32
    return %c0_i32, %c0_i32_0 : i32, i32
  }
  func.func @transform_10(%arg0: i32) -> (i32, i32) {
    %c0_i32 = arith.constant 0 : i32
    %c0_i32_0 = arith.constant 0 : i32
    return %arg0, %c0_i32 : i32, i32
  }
}

</mosaic_0001>

<llo_original>
// kernel: tpu_custom_call.1
$region0: #{tpu_custom_call.1}
  #allocation0 [shape = 'u32[]', space=smem, size = 0x4, offset = 0x4, fixed_abs, tag = 'smem constant byte address 0x4 - core index']
  #allocation1 [shape = 'u32[144,128]{1,0:T(1,128)}', space=vmem, size = 0x12000, scoped, tag = 'internal scratch']
  %s0 = inlined_call_operand.hbm [shape: bf16[8,256], index: 0, kind: input, shape index: {}]
  %s1 = inlined_call_operand.vmem [shape: f32[8,384], index: 1, kind: input, shape index: {}]
  %s2 = inlined_call_operand.hbm [shape: bf16[256,1536], index: 2, kind: input, shape index: {}]
  %s3 = inlined_call_operand.hbm [shape: f32[1,1536], index: 3, kind: input, shape index: {}]
  %s4 = inlined_call_operand.hbm [shape: bf16[1536,128], index: 4, kind: input, shape index: {}]
  %s5 = inlined_call_operand.hbm [shape: f32[7,128], index: 5, kind: input, shape index: {}]
  %s6 = inlined_call_operand.hbm [shape: f32[3,384], index: 6, kind: input, shape index: {}]
  %s7 = inlined_call_operand.vmem [shape: bf16[128,128], index: 7, kind: input, shape index: {}]
  %s8 = inlined_call_operand.hbm [shape: bf16[384,128], index: 8, kind: input, shape index: {}]
  %s9 = inlined_call_operand.vmem [shape: bf16[128,32], index: 9, kind: input, shape index: {}]
  %s10 = inlined_call_operand.vmem [shape: f32[8,1], index: 10, kind: output, shape index: {}]
  %s11 = sld [smem:[#allocation0]]
  $region78: #{tpu_custom_call.1} parent=0
    _
  %s13 = ssub.s32 1, %s11
  %s14 = scalar_select 0, %s13, %s11
  $region1: #{tpu_custom_call.1} parent=0
    #allocation2 [shape = 'u8[4096]{0}', space=vmem, size = 0x1000, scoped, tag = 'input window, operand 0, single buffered']
    #allocation3 [shape = 's32[1]{0}', space=sflag, size = 0x4, scoped, tag = 'scoped memory for tpu_custom_call.1']
    #allocation4 [shape = 'u8[786432]{0}', space=vmem, size = 0xc0000, scoped, tag = 'input window, operand 2, single buffered']
    #allocation5 [shape = 's32[1]{0}', space=sflag, size = 0x4, scoped, tag = 'scoped memory for tpu_custom_call.1']
    #allocation6 [shape = 'u8[6144]{0}', space=vmem, size = 0x1800, scoped, tag = 'input window, operand 3, single buffered']
    #allocation7 [shape = 'u8[393216]{0}', space=vmem, size = 0x60000, scoped, tag = 'input window, operand 4, single buffered']
    #allocation8 [shape = 's32[1]{0}', space=sflag, size = 0x4, scoped, tag = 'scoped memory for tpu_custom_call.1']
    #allocation9 [shape = 'u8[4096]{0}', space=vmem, size = 0x1000, scoped, tag = 'input window, operand 5, single buffered']
    #allocation10 [shape = 'u8[6144]{0}', space=vmem, size = 0x1800, scoped, tag = 'input window, operand 6, single buffered']
    #allocation11 [shape = 's32[1]{0}', space=sflag, size = 0x4, scoped, tag = 'scoped memory for tpu_custom_call.1']
    #allocation12 [shape = 'u8[98304]{0}', space=vmem, size = 0x18000, scoped, tag = 'input window, operand 8, single buffered']
    %15 = vsyncpa [#allocation3], 0
    %16 = vsyncpa [#allocation5], 0
    %17 = vsyncpa [#allocation8], 0
    %18 = vsyncpa [#allocation11], 0
    // Predicated region
    $region2: #{tpu_custom_call.1} parent=1 // pred_check
      _
    $region3: #{tpu_custom_call.1} parent=1 // pred_check_branch
      %20 = sbr.rel (0) target = $region5
    $region4: #{tpu_custom_call.1} parent=1 // pred_region
      %s22 = ssub.s32 128, 128
      %23 = vsyncadd [#allocation3], %s22
      %s25 = sshll.u32 [#allocation2], 4
      %s26 = int_to_ptr.vmem [resolvable:$true] %s25
      %28 = dma.hbm_to_vmem [thread:$0]  %s0, 128, %s26, [#allocation3]
    $region5: #{tpu_custom_call.1} parent=1 // pred_fallthru
      _
    // Predicated region
    $region6: #{tpu_custom_call.1} parent=1 // pred_check
      _
    $region7: #{tpu_custom_call.1} parent=1 // pred_check_branch
      %30 = sbr.rel (0) target = $region9
    $region8: #{tpu_custom_call.1} parent=1 // pred_region
      _
    $region9: #{tpu_custom_call.1} parent=1 // pred_fallthru
      _
    // Predicated region
    $region10: #{tpu_custom_call.1} parent=1 // pred_check
      _
    $region11: #{tpu_custom_call.1} parent=1 // pred_check_branch
      %32 = sbr.rel (0) target = $region13
    $region12: #{tpu_custom_call.1} parent=1 // pred_region
      %s34 = ssub.s32 24576, 24576
      %35 = vsyncadd [#allocation5], %s34
      %s36 = sshll.u32 [#allocation4], 4
      %s37 = int_to_ptr.vmem [resolvable:$true] %s36
      %42 = dma.hbm_to_vmem [thread:$0]  %s2, 24576, %s37, [#allocation5], 768, 768, 48
    $region13: #{tpu_custom_call.1} parent=1 // pred_fallthru
      _
    // Predicated region
    $region14: #{tpu_custom_call.1} parent=1 // pred_check
      _
    $region15: #{tpu_custom_call.1} parent=1 // pred_check_branch
      %44 = sbr.rel (0) target = $region17
    $region16: #{tpu_custom_call.1} parent=1 // pred_region
      %s46 = ssub.s32 192, 192
      %47 = vsyncadd [#allocation5], %s46
      %s49 = sshll.u32 [#allocation6], 4
      %s50 = int_to_ptr.vmem [resolvable:$true] %s49
      %52 = dma.hbm_to_vmem [thread:$0]  %s3, 192, %s50, [#allocation5]
    $region17: #{tpu_custom_call.1} parent=1 // pred_fallthru
      _
    // Predicated region
    $region18: #{tpu_custom_call.1} parent=1 // pred_check
      _
    $region19: #{tpu_custom_call.1} parent=1 // pred_check_branch
      %54 = sbr.rel (0) target = $region21
    $region20: #{tpu_custom_call.1} parent=1 // pred_region
      %s56 = ssub.s32 12288, 12288
      %57 = vsyncadd [#allocation8], %s56
      %s58 = sshll.u32 [#allocation7], 4
      %s59 = int_to_ptr.vmem [resolvable:$true] %s58
      %64 = dma.hbm_to_vmem [thread:$0]  %s4, 12288, %s59, [#allocation8], 64, 64, 4
    $region21: #{tpu_custom_call.1} parent=1 // pred_fallthru
      _
    // Predicated region
    $region22: #{tpu_custom_call.1} parent=1 // pred_check
      _
    $region23: #{tpu_custom_call.1} parent=1 // pred_check_branch
      %66 = sbr.rel (0) target = $region25
    $region24: #{tpu_custom_call.1} parent=1 // pred_region
      %s68 = ssub.s32 128, 128
      %69 = vsyncadd [#allocation8], %s68
      %s71 = sshll.u32 [#allocation9], 4
      %s72 = int_to_ptr.vmem [resolvable:$true] %s71
      %74 = dma.hbm_to_vmem [thread:$0]  %s5, 128, %s72, [#allocation8]
    $region25: #{tpu_custom_call.1} parent=1 // pred_fallthru
      _
    // Predicated region
    $region26: #{tpu_custom_call.1} parent=1 // pred_check
      _
    $region27: #{tpu_custom_call.1} parent=1 // pred_check_branch
      %76 = sbr.rel (0) target = $region29
    $region28: #{tpu_custom_call.1} parent=1 // pred_region
      %s78 = ssub.s32 192, 192
      %79 = vsyncadd [#allocation11], %s78
      %s81 = sshll.u32 [#allocation10], 4
      %s82 = int_to_ptr.vmem [resolvable:$true] %s81
      %84 = dma.hbm_to_vmem [thread:$0]  %s6, 192, %s82, [#allocation11]
    $region29: #{tpu_custom_call.1} parent=1 // pred_fallthru
      _
    // Predicated region
    $region30: #{tpu_custom_call.1} parent=1 // pred_check
      _
    $region31: #{tpu_custom_call.1} parent=1 // pred_check_branch
      %86 = sbr.rel (0) target = $region33
    $region32: #{tpu_custom_call.1} parent=1 // pred_region
      _
    $region33: #{tpu_custom_call.1} parent=1 // pred_fallthru
      _
    // Predicated region
    $region34: #{tpu_custom_call.1} parent=1 // pred_check
      _
    $region35: #{tpu_custom_call.1} parent=1 // pred_check_branch
      %88 = sbr.rel (0) target = $region37
    $region36: #{tpu_custom_call.1} parent=1 // pred_region
      %s90 = ssub.s32 3072, 3072
      %91 = vsyncadd [#allocation11], %s90
      %s92 = sshll.u32 [#allocation12], 4
      %s93 = int_to_ptr.vmem [resolvable:$true] %s92
      %98 = dma.hbm_to_vmem [thread:$0]  %s8, 3072, %s93, [#allocation11], 64, 64, 4
    $region37: #{tpu_custom_call.1} parent=1 // pred_fallthru
      _
    // Predicated region
    $region38: #{tpu_custom_call.1} parent=1 // pred_check
      _
    $region39: #{tpu_custom_call.1} parent=1 // pred_check_branch
      %100 = sbr.rel (0) target = $region41
    $region40: #{tpu_custom_call.1} parent=1 // pred_region
      _
    $region41: #{tpu_custom_call.1} parent=1 // pred_fallthru
      _
    // Predicated region
    $region42: #{tpu_custom_call.1} parent=1 // pred_check
      _
    $region43: #{tpu_custom_call.1} parent=1 // pred_check_branch
      %102 = sbr.rel (0) target = $region45
    $region44: #{tpu_custom_call.1} parent=1 // pred_region
      %103 = dma.done [#allocation3], 128
    $region45: #{tpu_custom_call.1} parent=1 // pred_fallthru
      _
    // Predicated region
    $region46: #{tpu_custom_call.1} parent=1 // pred_check
      _
    $region47: #{tpu_custom_call.1} parent=1 // pred_check_branch
      %105 = sbr.rel (0) target = $region49
    $region48: #{tpu_custom_call.1} parent=1 // pred_region
      %106 = dma.done [#allocation5], 24576
    $region49: #{tpu_custom_call.1} parent=1 // pred_fallthru
      _
    // Predicated region
    $region50: #{tpu_custom_call.1} parent=1 // pred_check
      _
    $region51: #{tpu_custom_call.1} parent=1 // pred_check_branch
      %108 = sbr.rel (0) target = $region53
    $region52: #{tpu_custom_call.1} parent=1 // pred_region
      %109 = dma.done [#allocation5], 192
    $region53: #{tpu_custom_call.1} parent=1 // pred_fallthru
      _
    // Predicated region
    $region54: #{tpu_custom_call.1} parent=1 // pred_check
      _
    $region55: #{tpu_custom_call.1} parent=1 // pred_check_branch
      %111 = sbr.rel (0) target = $region57
    $region56: #{tpu_custom_call.1} parent=1 // pred_region
      %112 = dma.done [#allocation8], 12288
    $region57: #{tpu_custom_call.1} parent=1 // pred_fallthru
      _
    // Predicated region
    $region58: #{tpu_custom_call.1} parent=1 // pred_check
      _
    $region59: #{tpu_custom_call.1} parent=1 // pred_check_branch
      %114 = sbr.rel (0) target = $region61
    $region60: #{tpu_custom_call.1} parent=1 // pred_region
      %115 = dma.done [#allocation8], 128
    $region61: #{tpu_custom_call.1} parent=1 // pred_fallthru
      _
    // Predicated region
    $region62: #{tpu_custom_call.1} parent=1 // pred_check
      _
    $region63: #{tpu_custom_call.1} parent=1 // pred_check_branch
      %117 = sbr.rel (0) target = $region65
    $region64: #{tpu_custom_call.1} parent=1 // pred_region
      %118 = dma.done [#allocation11], 192
    $region65: #{tpu_custom_call.1} parent=1 // pred_fallthru
      _
    // Predicated region
    $region66: #{tpu_custom_call.1} parent=1 // pred_check
      _
    $region67: #{tpu_custom_call.1} parent=1 // pred_check_branch
      %120 = sbr.rel (0) target = $region69
    $region68: #{tpu_custom_call.1} parent=1 // pred_region
      %121 = dma.done [#allocation11], 3072
    $region69: #{tpu_custom_call.1} parent=1 // pred_fallthru
      _
    %v123 = vld [vmem:[#allocation9] sm:$0x1]
    %v124 = vld [vmem:[#allocation9 + $0x1] sm:$0x1]
    %v125 = vld [vmem:[#allocation9 + $0x2] sm:$0x1]
    %v126 = vld [vmem:[#allocation9 + $0x3] sm:$0x1]
    %v127 = vld [vmem:[#allocation9 + $0x4] sm:$0x1]
    %v128 = vld [vmem:[#allocation9 + $0x5] sm:$0x1]
    %v129 = vld [vmem:[#allocation9 + $0x6] sm:$0x1]
    %v130 = vld [vmem:[#allocation10] ss:$4 sm:$0x7]
    %s131 = scalar_lea.vmem [#allocation10], 1
    %v132 = vld [vmem:[%s131] ss:$4 sm:$0x7]
    %s133 = scalar_lea.vmem [#allocation10], 2
    %v134 = vld [vmem:[%s133] ss:$4 sm:$0x7]
    %v135 = vld [vmem:[#allocation2] sm:$0xff]
    %v136 = vld [vmem:[#allocation4] sm:$0xff]
    %v137 = vld [vmem:[#allocation4 + $0x8] sm:$0xff]
    %v138 = vld [vmem:[#allocation4 + $0x10] sm:$0xff]
    %v139 = vld [vmem:[#allocation4 + $0x18] sm:$0xff]
    %v140 = vld [vmem:[#allocation4 + $0x20] sm:$0xff]
    %v141 = vld [vmem:[#allocation4 + $0x28] sm:$0xff]
    %v142 = vld [vmem:[#allocation4 + $0x30] sm:$0xff]
    %v143 = vld [vmem:[#allocation4 + $0x38] sm:$0xff]
    %v144 = vld [vmem:[#allocation4 + $0x40] sm:$0xff]
    %v145 = vld [vmem:[#allocation4 + $0x48] sm:$0xff]
    %v146 = vld [vmem:[#allocation4 + $0x50] sm:$0xff]
    %v147 = vld [vmem:[#allocation4 + $0x58] sm:$0xff]
    %v148 = vld [vmem:[#allocation4 + $0x60] sm:$0xff]
    %v149 = vld [vmem:[#allocation4 + $0x68] sm:$0xff]
    %v150 = vld [vmem:[#allocation4 + $0x70] sm:$0xff]
    %v151 = vld [vmem:[#allocation4 + $0x78] sm:$0xff]
    %v152 = vld [vmem:[#allocation4 + $0x80] sm:$0xff]
    %v153 = vld [vmem:[#allocation4 + $0x88] sm:$0xff]
    %v154 = vld [vmem:[#allocation4 + $0x90] sm:$0xff]
    %v155 = vld [vmem:[#allocation4 + $0x98] sm:$0xff]
    %v156 = vld [vmem:[#allocation4 + $0xa0] sm:$0xff]
    %v157 = vld [vmem:[#allocation4 + $0xa8] sm:$0xff]
    %v158 = vld [vmem:[#allocation4 + $0xb0] sm:$0xff]
    %v159 = vld [vmem:[#allocation4 + $0xb8] sm:$0xff]
    %v160 = vld [vmem:[#allocation4 + $0xc0] sm:$0xff]
    %v161 = vld [vmem:[#allocation4 + $0xc8] sm:$0xff]
    %v162 = vld [vmem:[#allocation4 + $0xd0] sm:$0xff]
    %v163 = vld [vmem:[#allocation4 + $0xd8] sm:$0xff]
    %v164 = vld [vmem:[#allocation4 + $0xe0] sm:$0xff]
    %v165 = vld [vmem:[#allocation4 + $0xe8] sm:$0xff]
    %v166 = vld [vmem:[#allocation4 + $0xf0] sm:$0xff]
    %v167 = vld [vmem:[#allocation4 + $0xf8] sm:$0xff]
    %v168 = vld [vmem:[#allocation4 + $0x100] sm:$0xff]
    %v169 = vld [vmem:[#allocation4 + $0x108] sm:$0xff]
    %v170 = vld [vmem:[#allocation4 + $0x110] sm:$0xff]
    %v171 = vld [vmem:[#allocation4 + $0x118] sm:$0xff]
    %v172 = vld [vmem:[#allocation4 + $0x120] sm:$0xff]
    %v173 = vld [vmem:[#allocation4 + $0x128] sm:$0xff]
    %v174 = vld [vmem:[#allocation4 + $0x130] sm:$0xff]
    %v175 = vld [vmem:[#allocation4 + $0x138] sm:$0xff]
    %v176 = vld [vmem:[#allocation4 + $0x140] sm:$0xff]
    %v177 = vld [vmem:[#allocation4 + $0x148] sm:$0xff]
    %v178 = vld [vmem:[#allocation4 + $0x150] sm:$0xff]
    %v179 = vld [vmem:[#allocation4 + $0x158] sm:$0xff]
    %v180 = vld [vmem:[#allocation4 + $0x160] sm:$0xff]
    %v181 = vld [vmem:[#allocation4 + $0x168] sm:$0xff]
    %v182 = vld [vmem:[#allocation4 + $0x170] sm:$0xff]
    %v183 = vld [vmem:[#allocation4 + $0x178] sm:$0xff]
    %v184 = vld [vmem:[#allocation4 + $0x180] sm:$0xff]
    %v185 = vld [vmem:[#allocation4 + $0x188] sm:$0xff]
    %v186 = vld [vmem:[#allocation4 + $0x190] sm:$0xff]
    %v187 = vld [vmem:[#allocation4 + $0x198] sm:$0xff]
    %v188 = vld [vmem:[#allocation4 + $0x1a0] sm:$0xff]
    %v189 = vld [vmem:[#allocation4 + $0x1a8] sm:$0xff]
    %v190 = vld [vmem:[#allocation4 + $0x1b0] sm:$0xff]
    %v191 = vld [vmem:[#allocation4 + $0x1b8] sm:$0xff]
    %v192 = vld [vmem:[#allocation4 + $0x1c0] sm:$0xff]
    %v193 = vld [vmem:[#allocation4 + $0x1c8] sm:$0xff]
    %v194 = vld [vmem:[#allocation4 + $0x1d0] sm:$0xff]
    %v195 = vld [vmem:[#allocation4 + $0x1d8] sm:$0xff]
    %v196 = vld [vmem:[#allocation4 + $0x1e0] sm:$0xff]
    %v197 = vld [vmem:[#allocation4 + $0x1e8] sm:$0xff]
    %v198 = vld [vmem:[#allocation4 + $0x1f0] sm:$0xff]
    %v199 = vld [vmem:[#allocation4 + $0x1f8] sm:$0xff]
    %v200 = vld [vmem:[#allocation4 + $0x200] sm:$0xff]
    %v201 = vld [vmem:[#allocation4 + $0x208] sm:$0xff]
    %v202 = vld [vmem:[#allocation4 + $0x210] sm:$0xff]
    %v203 = vld [vmem:[#allocation4 + $0x218] sm:$0xff]
    %v204 = vld [vmem:[#allocation4 + $0x220] sm:$0xff]
    %v205 = vld [vmem:[#allocation4 + $0x228] sm:$0xff]
    %v206 = vld [vmem:[#allocation4 + $0x230] sm:$0xff]
    %v207 = vld [vmem:[#allocation4 + $0x238] sm:$0xff]
    %v208 = vld [vmem:[#allocation4 + $0x240] sm:$0xff]
    %v209 = vld [vmem:[#allocation4 + $0x248] sm:$0xff]
    %v210 = vld [vmem:[#allocation4 + $0x250] sm:$0xff]
    %v211 = vld [vmem:[#allocation4 + $0x258] sm:$0xff]
    %v212 = vld [vmem:[#allocation4 + $0x260] sm:$0xff]
    %v213 = vld [vmem:[#allocation4 + $0x268] sm:$0xff]
    %v214 = vld [vmem:[#allocation4 + $0x270] sm:$0xff]
    %v215 = vld [vmem:[#allocation4 + $0x278] sm:$0xff]
    %v216 = vld [vmem:[#allocation4 + $0x280] sm:$0xff]
    %v217 = vld [vmem:[#allocation4 + $0x288] sm:$0xff]
    %v218 = vld [vmem:[#allocation4 + $0x290] sm:$0xff]
    %v219 = vld [vmem:[#allocation4 + $0x298] sm:$0xff]
    %v220 = vld [vmem:[#allocation4 + $0x2a0] sm:$0xff]
    %v221 = vld [vmem:[#allocation4 + $0x2a8] sm:$0xff]
    %v222 = vld [vmem:[#allocation4 + $0x2b0] sm:$0xff]
    %v223 = vld [vmem:[#allocation4 + $0x2b8] sm:$0xff]
    %v224 = vld [vmem:[#allocation4 + $0x2c0] sm:$0xff]
    %v225 = vld [vmem:[#allocation4 + $0x2c8] sm:$0xff]
    %v226 = vld [vmem:[#allocation4 + $0x2d0] sm:$0xff]
    %v227 = vld [vmem:[#allocation4 + $0x2d8] sm:$0xff]
    %v228 = vld [vmem:[#allocation4 + $0x2e0] sm:$0xff]
    %v229 = vld [vmem:[#allocation4 + $0x2e8] sm:$0xff]
    %v230 = vld [vmem:[#allocation4 + $0x2f0] sm:$0xff]
    %v231 = vld [vmem:[#allocation4 + $0x2f8] sm:$0xff]
    %v232 = vld [vmem:[#allocation4 + $0x300] sm:$0xff]
    %v233 = vld [vmem:[#allocation4 + $0x308] sm:$0xff]
    %v234 = vld [vmem:[#allocation4 + $0x310] sm:$0xff]
    %v235 = vld [vmem:[#allocation4 + $0x318] sm:$0xff]
    %v236 = vld [vmem:[#allocation4 + $0x320] sm:$0xff]
    %v237 = vld [vmem:[#allocation4 + $0x328] sm:$0xff]
    %v238 = vld [vmem:[#allocation4 + $0x330] sm:$0xff]
    %v239 = vld [vmem:[#allocation4 + $0x338] sm:$0xff]
    %v240 = vld [vmem:[#allocation4 + $0x340] sm:$0xff]
    %v241 = vld [vmem:[#allocation4 + $0x348] sm:$0xff]
    %v242 = vld [vmem:[#allocation4 + $0x350] sm:$0xff]
    %v243 = vld [vmem:[#allocation4 + $0x358] sm:$0xff]
    %v244 = vld [vmem:[#allocation4 + $0x360] sm:$0xff]
    %v245 = vld [vmem:[#allocation4 + $0x368] sm:$0xff]
    %v246 = vld [vmem:[#allocation4 + $0x370] sm:$0xff]
    %v247 = vld [vmem:[#allocation4 + $0x378] sm:$0xff]
    %v248 = vld [vmem:[#allocation4 + $0x380] sm:$0xff]
    %v249 = vld [vmem:[#allocation4 + $0x388] sm:$0xff]
    %v250 = vld [vmem:[#allocation4 + $0x390] sm:$0xff]
    %v251 = vld [vmem:[#allocation4 + $0x398] sm:$0xff]
    %v252 = vld [vmem:[#allocation4 + $0x3a0] sm:$0xff]
    %v253 = vld [vmem:[#allocation4 + $0x3a8] sm:$0xff]
    %v254 = vld [vmem:[#allocation4 + $0x3b0] sm:$0xff]
    %v255 = vld [vmem:[#allocation4 + $0x3b8] sm:$0xff]
    %v256 = vld [vmem:[#allocation4 + $0x3c0] sm:$0xff]
    %v257 = vld [vmem:[#allocation4 + $0x3c8] sm:$0xff]
    %v258 = vld [vmem:[#allocation4 + $0x3d0] sm:$0xff]
    %v259 = vld [vmem:[#allocation4 + $0x3d8] sm:$0xff]
    %v260 = vld [vmem:[#allocation4 + $0x3e0] sm:$0xff]
    %v261 = vld [vmem:[#allocation4 + $0x3e8] sm:$0xff]
    %v262 = vld [vmem:[#allocation4 + $0x3f0] sm:$0xff]
    %v263 = vld [vmem:[#allocation4 + $0x3f8] sm:$0xff]
    %v264 = vld [vmem:[#allocation4 + $0x400] sm:$0xff]
    %v265 = vld [vmem:[#allocation4 + $0x408] sm:$0xff]
    %v266 = vld [vmem:[#allocation4 + $0x410] sm:$0xff]
    %v267 = vld [vmem:[#allocation4 + $0x418] sm:$0xff]
    %v268 = vld [vmem:[#allocation4 + $0x420] sm:$0xff]
    %v269 = vld [vmem:[#allocation4 + $0x428] sm:$0xff]
    %v270 = vld [vmem:[#allocation4 + $0x430] sm:$0xff]
    %v271 = vld [vmem:[#allocation4 + $0x438] sm:$0xff]
    %v272 = vld [vmem:[#allocation4 + $0x440] sm:$0xff]
    %v273 = vld [vmem:[#allocation4 + $0x448] sm:$0xff]
    %v274 = vld [vmem:[#allocation4 + $0x450] sm:$0xff]
    %v275 = vld [vmem:[#allocation4 + $0x458] sm:$0xff]
    %v276 = vld [vmem:[#allocation4 + $0x460] sm:$0xff]
    %v277 = vld [vmem:[#allocation4 + $0x468] sm:$0xff]
    %v278 = vld [vmem:[#allocation4 + $0x470] sm:$0xff]
    %v279 = vld [vmem:[#allocation4 + $0x478] sm:$0xff]
    %v280 = vld [vmem:[#allocation4 + $0x480] sm:$0xff]
    %v281 = vld [vmem:[#allocation4 + $0x488] sm:$0xff]
    %v282 = vld [vmem:[#allocation4 + $0x490] sm:$0xff]
    %v283 = vld [vmem:[#allocation4 + $0x498] sm:$0xff]
    %v284 = vld [vmem:[#allocation4 + $0x4a0] sm:$0xff]
    %v285 = vld [vmem:[#allocation4 + $0x4a8] sm:$0xff]
    %v286 = vld [vmem:[#allocation4 + $0x4b0] sm:$0xff]
    %v287 = vld [vmem:[#allocation4 + $0x4b8] sm:$0xff]
    %v288 = vld [vmem:[#allocation4 + $0x4c0] sm:$0xff]
    %v289 = vld [vmem:[#allocation4 + $0x4c8] sm:$0xff]
    %v290 = vld [vmem:[#allocation4 + $0x4d0] sm:$0xff]
    %v291 = vld [vmem:[#allocation4 + $0x4d8] sm:$0xff]
    %v292 = vld [vmem:[#allocation4 + $0x4e0] sm:$0xff]
    %v293 = vld [vmem:[#allocation4 + $0x4e8] sm:$0xff]
    %v294 = vld [vmem:[#allocation4 + $0x4f0] sm:$0xff]
    %v295 = vld [vmem:[#allocation4 + $0x4f8] sm:$0xff]
    %v296 = vld [vmem:[#allocation4 + $0x500] sm:$0xff]
    %v297 = vld [vmem:[#allocation4 + $0x508] sm:$0xff]
    %v298 = vld [vmem:[#allocation4 + $0x510] sm:$0xff]
    %v299 = vld [vmem:[#allocation4 + $0x518] sm:$0xff]
    %v300 = vld [vmem:[#allocation4 + $0x520] sm:$0xff]
    %v301 = vld [vmem:[#allocation4 + $0x528] sm:$0xff]
    %v302 = vld [vmem:[#allocation4 + $0x530] sm:$0xff]
    %v303 = vld [vmem:[#allocation4 + $0x538] sm:$0xff]
    %v304 = vld [vmem:[#allocation4 + $0x540] sm:$0xff]
    %v305 = vld [vmem:[#allocation4 + $0x548] sm:$0xff]
    %v306 = vld [vmem:[#allocation4 + $0x550] sm:$0xff]
    %v307 = vld [vmem:[#allocation4 + $0x558] sm:$0xff]
    %v308 = vld [vmem:[#allocation4 + $0x560] sm:$0xff]
    %v309 = vld [vmem:[#allocation4 + $0x568] sm:$0xff]
    %v310 = vld [vmem:[#allocation4 + $0x570] sm:$0xff]
    %v311 = vld [vmem:[#allocation4 + $0x578] sm:$0xff]
    %v312 = vld [vmem:[#allocation4 + $0x580] sm:$0xff]
    %v313 = vld [vmem:[#allocation4 + $0x588] sm:$0xff]
    %v314 = vld [vmem:[#allocation4 + $0x590] sm:$0xff]
    %v315 = vld [vmem:[#allocation4 + $0x598] sm:$0xff]
    %v316 = vld [vmem:[#allocation4 + $0x5a0] sm:$0xff]
    %v317 = vld [vmem:[#allocation4 + $0x5a8] sm:$0xff]
    %v318 = vld [vmem:[#allocation4 + $0x5b0] sm:$0xff]
    %v319 = vld [vmem:[#allocation4 + $0x5b8] sm:$0xff]
    %v320 = vld [vmem:[#allocation4 + $0x5c0] sm:$0xff]
    %v321 = vld [vmem:[#allocation4 + $0x5c8] sm:$0xff]
    %v322 = vld [vmem:[#allocation4 + $0x5d0] sm:$0xff]
    %v323 = vld [vmem:[#allocation4 + $0x5d8] sm:$0xff]
    %v324 = vld [vmem:[#allocation4 + $0x5e0] sm:$0xff]
    %v325 = vld [vmem:[#allocation4 + $0x5e8] sm:$0xff]
    %v326 = vld [vmem:[#allocation4 + $0x5f0] sm:$0xff]
    %v327 = vld [vmem:[#allocation4 + $0x5f8] sm:$0xff]
    %v328 = vld [vmem:[#allocation6] sm:$0xff]
    %v329 = vld [vmem:[#allocation6 + $0x8] sm:$0xf]
    %v332 = vlaneseq
    %v333 = vshrl.u32 %v332, 7
    %v334 = vsub.s32 0, %v333
    %v335 = vrot.slane %v328, %v334
    %v336 = vlaneseq
    %v337 = vshrl.u32 %v336, 7
    %v338 = vsub.s32 1, %v337
    %v339 = vrot.slane %v328, %v338
    %v340 = vlaneseq
    %v341 = vshrl.u32 %v340, 7
    %v342 = vsub.s32 2, %v341
    %v343 = vrot.slane %v328, %v342
    %v344 = vlaneseq
    %v345 = vshrl.u32 %v344, 7
    %v346 = vsub.s32 3, %v345
    %v347 = vrot.slane %v328, %v346
    %v348 = vlaneseq
    %v349 = vshrl.u32 %v348, 7
    %v350 = vsub.s32 4, %v349
    %v351 = vrot.slane %v328, %v350
    %v352 = vlaneseq
    %v353 = vshrl.u32 %v352, 7
    %v354 = vsub.s32 5, %v353
    %v355 = vrot.slane %v328, %v354
    %v356 = vlaneseq
    %v357 = vshrl.u32 %v356, 7
    %v358 = vsub.s32 6, %v357
    %v359 = vrot.slane %v328, %v358
    %v360 = vlaneseq
    %v361 = vshrl.u32 %v360, 7
    %v362 = vsub.s32 7, %v361
    %v363 = vrot.slane %v328, %v362
    %v364 = vlaneseq
    %v365 = vshrl.u32 %v364, 7
    %v366 = vsub.s32 0, %v365
    %v367 = vrot.slane %v329, %v366
    %v368 = vlaneseq
    %v369 = vshrl.u32 %v368, 7
    %v370 = vsub.s32 1, %v369
    %v371 = vrot.slane %v329, %v370
    %v372 = vlaneseq
    %v373 = vshrl.u32 %v372, 7
    %v374 = vsub.s32 2, %v373
    %v375 = vrot.slane %v329, %v374
    %v376 = vlaneseq
    %v377 = vshrl.u32 %v376, 7
    %v378 = vsub.s32 3, %v377
    %v379 = vrot.slane %v329, %v378
    %v393 = vunpack.c.l.b16 %v135
    %v394 = vunpack.c.h.b16 %v135
    %v395 = vpack.c.b16 %v393, %v393
    %v396 = vpack.c.b16 %v394, %v394
    %v591 = vunpack.c.l.b16 %v136
    %v592 = vunpack.c.h.b16 %v136
    %v593 = vunpack.c.l.b16 %v137
    %v594 = vunpack.c.h.b16 %v137
    %v595 = vunpack.c.l.b16 %v138
    %v596 = vunpack.c.h.b16 %v138
    %v597 = vunpack.c.l.b16 %v139
    %v598 = vunpack.c.h.b16 %v139
    %v599 = vunpack.c.l.b16 %v140
    %v600 = vunpack.c.h.b16 %v140
    %v601 = vunpack.c.l.b16 %v141
    %v602 = vunpack.c.h.b16 %v141
    %v603 = vunpack.c.l.b16 %v142
    %v604 = vunpack.c.h.b16 %v142
    %v605 = vunpack.c.l.b16 %v143
    %v606 = vunpack.c.h.b16 %v143
    %v607 = vunpack.c.l.b16 %v144
    %v608 = vunpack.c.h.b16 %v144
    %v609 = vunpack.c.l.b16 %v145
    %v610 = vunpack.c.h.b16 %v145
    %v611 = vunpack.c.l.b16 %v146
    %v612 = vunpack.c.h.b16 %v146
    %v613 = vunpack.c.l.b16 %v147
    %v614 = vunpack.c.h.b16 %v147
    %v615 = vunpack.c.l.b16 %v148
    %v616 = vunpack.c.h.b16 %v148
    %v617 = vunpack.c.l.b16 %v149
    %v618 = vunpack.c.h.b16 %v149
    %v619 = vunpack.c.l.b16 %v150
    %v620 = vunpack.c.h.b16 %v150
    %v621 = vunpack.c.l.b16 %v151
    %v622 = vunpack.c.h.b16 %v151
    %v623 = vunpack.c.l.b16 %v152
    %v624 = vunpack.c.h.b16 %v152
    %v625 = vunpack.c.l.b16 %v153
    %v626 = vunpack.c.h.b16 %v153
    %v627 = vunpack.c.l.b16 %v154
    %v628 = vunpack.c.h.b16 %v154
    %v629 = vunpack.c.l.b16 %v155
    %v630 = vunpack.c.h.b16 %v155
    %v631 = vunpack.c.l.b16 %v156
    %v632 = vunpack.c.h.b16 %v156
    %v633 = vunpack.c.l.b16 %v157
    %v634 = vunpack.c.h.b16 %v157
    %v635 = vunpack.c.l.b16 %v158
    %v636 = vunpack.c.h.b16 %v158
    %v637 = vunpack.c.l.b16 %v159
    %v638 = vunpack.c.h.b16 %v159
    %v639 = vunpack.c.l.b16 %v160
    %v640 = vunpack.c.h.b16 %v160
    %v641 = vunpack.c.l.b16 %v161
    %v642 = vunpack.c.h.b16 %v161
    %v643 = vunpack.c.l.b16 %v162
    %v644 = vunpack.c.h.b16 %v162
    %v645 = vunpack.c.l.b16 %v163
    %v646 = vunpack.c.h.b16 %v163
    %v647 = vunpack.c.l.b16 %v164
    %v648 = vunpack.c.h.b16 %v164
    %v649 = vunpack.c.l.b16 %v165
    %v650 = vunpack.c.h.b16 %v165
    %v651 = vunpack.c.l.b16 %v166
    %v652 = vunpack.c.h.b16 %v166
    %v653 = vunpack.c.l.b16 %v167
    %v654 = vunpack.c.h.b16 %v167
    %v655 = vunpack.c.l.b16 %v168
    %v656 = vunpack.c.h.b16 %v168
    %v657 = vunpack.c.l.b16 %v169
    %v658 = vunpack.c.h.b16 %v169
    %v659 = vunpack.c.l.b16 %v170
    %v660 = vunpack.c.h.b16 %v170
    %v661 = vunpack.c.l.b16 %v171
    %v662 = vunpack.c.h.b16 %v171
    %v663 = vunpack.c.l.b16 %v172
    %v664 = vunpack.c.h.b16 %v172
    %v665 = vunpack.c.l.b16 %v173
    %v666 = vunpack.c.h.b16 %v173
    %v667 = vunpack.c.l.b16 %v174
    %v668 = vunpack.c.h.b16 %v174
    %v669 = vunpack.c.l.b16 %v175
    %v670 = vunpack.c.h.b16 %v175
    %v671 = vunpack.c.l.b16 %v176
    %v672 = vunpack.c.h.b16 %v176
    %v673 = vunpack.c.l.b16 %v177
    %v674 = vunpack.c.h.b16 %v177
    %v675 = vunpack.c.l.b16 %v178
    %v676 = vunpack.c.h.b16 %v178
    %v677 = vunpack.c.l.b16 %v179
    %v678 = vunpack.c.h.b16 %v179
    %v679 = vunpack.c.l.b16 %v180
    %v680 = vunpack.c.h.b16 %v180
    %v681 = vunpack.c.l.b16 %v181
    %v682 = vunpack.c.h.b16 %v181
    %v683 = vunpack.c.l.b16 %v182
    %v684 = vunpack.c.h.b16 %v182
    %v685 = vunpack.c.l.b16 %v183
    %v686 = vunpack.c.h.b16 %v183
    %v687 = vunpack.c.l.b16 %v184
    %v688 = vunpack.c.h.b16 %v184
    %v689 = vunpack.c.l.b16 %v185
    %v690 = vunpack.c.h.b16 %v185
    %v691 = vunpack.c.l.b16 %v186
    %v692 = vunpack.c.h.b16 %v186
    %v693 = vunpack.c.l.b16 %v187
    %v694 = vunpack.c.h.b16 %v187
    %v695 = vunpack.c.l.b16 %v188
    %v696 = vunpack.c.h.b16 %v188
    %v697 = vunpack.c.l.b16 %v189
    %v698 = vunpack.c.h.b16 %v189
    %v699 = vunpack.c.l.b16 %v190
    %v700 = vunpack.c.h.b16 %v190
    %v701 = vunpack.c.l.b16 %v191
    %v702 = vunpack.c.h.b16 %v191
    %v703 = vunpack.c.l.b16 %v192
    %v704 = vunpack.c.h.b16 %v192
    %v705 = vunpack.c.l.b16 %v193
    %v706 = vunpack.c.h.b16 %v193
    %v707 = vunpack.c.l.b16 %v194
    %v708 = vunpack.c.h.b16 %v194
    %v709 = vunpack.c.l.b16 %v195
    %v710 = vunpack.c.h.b16 %v195
    %v711 = vunpack.c.l.b16 %v196
    %v712 = vunpack.c.h.b16 %v196
    %v713 = vunpack.c.l.b16 %v197
    %v714 = vunpack.c.h.b16 %v197
    %v715 = vunpack.c.l.b16 %v198
    %v716 = vunpack.c.h.b16 %v198
    %v717 = vunpack.c.l.b16 %v199
    %v718 = vunpack.c.h.b16 %v199
    %v719 = vunpack.c.l.b16 %v200
    %v720 = vunpack.c.h.b16 %v200
    %v721 = vunpack.c.l.b16 %v201
    %v722 = vunpack.c.h.b16 %v201
    %v723 = vunpack.c.l.b16 %v202
    %v724 = vunpack.c.h.b16 %v202
    %v725 = vunpack.c.l.b16 %v203
    %v726 = vunpack.c.h.b16 %v203
    %v727 = vunpack.c.l.b16 %v204
    %v728 = vunpack.c.h.b16 %v204
    %v729 = vunpack.c.l.b16 %v205
    %v730 = vunpack.c.h.b16 %v205
    %v731 = vunpack.c.l.b16 %v206
    %v732 = vunpack.c.h.b16 %v206
    %v733 = vunpack.c.l.b16 %v207
    %v734 = vunpack.c.h.b16 %v207
    %v735 = vunpack.c.l.b16 %v208
    %v736 = vunpack.c.h.b16 %v208
    %v737 = vunpack.c.l.b16 %v209
    %v738 = vunpack.c.h.b16 %v209
    %v739 = vunpack.c.l.b16 %v210
    %v740 = vunpack.c.h.b16 %v210
    %v741 = vunpack.c.l.b16 %v211
    %v742 = vunpack.c.h.b16 %v211
    %v743 = vunpack.c.l.b16 %v212
    %v744 = vunpack.c.h.b16 %v212
    %v745 = vunpack.c.l.b16 %v213
    %v746 = vunpack.c.h.b16 %v213
    %v747 = vunpack.c.l.b16 %v214
    %v748 = vunpack.c.h.b16 %v214
    %v749 = vunpack.c.l.b16 %v215
    %v750 = vunpack.c.h.b16 %v215
    %v751 = vunpack.c.l.b16 %v216
    %v752 = vunpack.c.h.b16 %v216
    %v753 = vunpack.c.l.b16 %v217
    %v754 = vunpack.c.h.b16 %v217
    %v755 = vunpack.c.l.b16 %v218
    %v756 = vunpack.c.h.b16 %v218
    %v757 = vunpack.c.l.b16 %v219
    %v758 = vunpack.c.h.b16 %v219
    %v759 = vunpack.c.l.b16 %v220
    %v760 = vunpack.c.h.b16 %v220
    %v761 = vunpack.c.l.b16 %v221
    %v762 = vunpack.c.h.b16 %v221
    %v763 = vunpack.c.l.b16 %v222
    %v764 = vunpack.c.h.b16 %v222
    %v765 = vunpack.c.l.b16 %v223
    %v766 = vunpack.c.h.b16 %v223
    %v767 = vunpack.c.l.b16 %v224
    %v768 = vunpack.c.h.b16 %v224
    %v769 = vunpack.c.l.b16 %v225
    %v770 = vunpack.c.h.b16 %v225
    %v771 = vunpack.c.l.b16 %v226
    %v772 = vunpack.c.h.b16 %v226
    %v773 = vunpack.c.l.b16 %v227
    %v774 = vunpack.c.h.b16 %v227
    %v775 = vunpack.c.l.b16 %v228
    %v776 = vunpack.c.h.b16 %v228
    %v777 = vunpack.c.l.b16 %v229
    %v778 = vunpack.c.h.b16 %v229
    %v779 = vunpack.c.l.b16 %v230
    %v780 = vunpack.c.h.b16 %v230
    %v781 = vunpack.c.l.b16 %v231
    %v782 = vunpack.c.h.b16 %v231
    %v783 = vunpack.c.l.b16 %v232
    %v784 = vunpack.c.h.b16 %v232
    %v785 = vunpack.c.l.b16 %v233
    %v786 = vunpack.c.h.b16 %v233
    %v787 = vunpack.c.l.b16 %v234
    %v788 = vunpack.c.h.b16 %v234
    %v789 = vunpack.c.l.b16 %v235
    %v790 = vunpack.c.h.b16 %v235
    %v791 = vunpack.c.l.b16 %v236
    %v792 = vunpack.c.h.b16 %v236
    %v793 = vunpack.c.l.b16 %v237
    %v794 = vunpack.c.h.b16 %v237
    %v795 = vunpack.c.l.b16 %v238
    %v796 = vunpack.c.h.b16 %v238
    %v797 = vunpack.c.l.b16 %v239
    %v798 = vunpack.c.h.b16 %v239
    %v799 = vunpack.c.l.b16 %v240
    %v800 = vunpack.c.h.b16 %v240
    %v801 = vunpack.c.l.b16 %v241
    %v802 = vunpack.c.h.b16 %v241
    %v803 = vunpack.c.l.b16 %v242
    %v804 = vunpack.c.h.b16 %v242
    %v805 = vunpack.c.l.b16 %v243
    %v806 = vunpack.c.h.b16 %v243
    %v807 = vunpack.c.l.b16 %v244
    %v808 = vunpack.c.h.b16 %v244
    %v809 = vunpack.c.l.b16 %v245
    %v810 = vunpack.c.h.b16 %v245
    %v811 = vunpack.c.l.b16 %v246
    %v812 = vunpack.c.h.b16 %v246
    %v813 = vunpack.c.l.b16 %v247
    %v814 = vunpack.c.h.b16 %v247
    %v815 = vunpack.c.l.b16 %v248
    %v816 = vunpack.c.h.b16 %v248
    %v817 = vunpack.c.l.b16 %v249
    %v818 = vunpack.c.h.b16 %v249
    %v819 = vunpack.c.l.b16 %v250
    %v820 = vunpack.c.h.b16 %v250
    %v821 = vunpack.c.l.b16 %v251
    %v822 = vunpack.c.h.b16 %v251
    %v823 = vunpack.c.l.b16 %v252
    %v824 = vunpack.c.h.b16 %v252
    %v825 = vunpack.c.l.b16 %v253
    %v826 = vunpack.c.h.b16 %v253
    %v827 = vunpack.c.l.b16 %v254
    %v828 = vunpack.c.h.b16 %v254
    %v829 = vunpack.c.l.b16 %v255
    %v830 = vunpack.c.h.b16 %v255
    %v831 = vunpack.c.l.b16 %v256
    %v832 = vunpack.c.h.b16 %v256
    %v833 = vunpack.c.l.b16 %v257
    %v834 = vunpack.c.h.b16 %v257
    %v835 = vunpack.c.l.b16 %v258
    %v836 = vunpack.c.h.b16 %v258
    %v837 = vunpack.c.l.b16 %v259
    %v838 = vunpack.c.h.b16 %v259
    %v839 = vunpack.c.l.b16 %v260
    %v840 = vunpack.c.h.b16 %v260
    %v841 = vunpack.c.l.b16 %v261
    %v842 = vunpack.c.h.b16 %v261
    %v843 = vunpack.c.l.b16 %v262
    %v844 = vunpack.c.h.b16 %v262
    %v845 = vunpack.c.l.b16 %v263
    %v846 = vunpack.c.h.b16 %v263
    %v847 = vunpack.c.l.b16 %v264
    %v848 = vunpack.c.h.b16 %v264
    %v849 = vunpack.c.l.b16 %v265
    %v850 = vunpack.c.h.b16 %v265
    %v851 = vunpack.c.l.b16 %v266
    %v852 = vunpack.c.h.b16 %v266
    %v853 = vunpack.c.l.b16 %v267
    %v854 = vunpack.c.h.b16 %v267
    %v855 = vunpack.c.l.b16 %v268
    %v856 = vunpack.c.h.b16 %v268
    %v857 = vunpack.c.l.b16 %v269
    %v858 = vunpack.c.h.b16 %v269
    %v859 = vunpack.c.l.b16 %v270
    %v860 = vunpack.c.h.b16 %v270
    %v861 = vunpack.c.l.b16 %v271
    %v862 = vunpack.c.h.b16 %v271
    %v863 = vunpack.c.l.b16 %v272
    %v864 = vunpack.c.h.b16 %v272
    %v865 = vunpack.c.l.b16 %v273
    %v866 = vunpack.c.h.b16 %v273
    %v867 = vunpack.c.l.b16 %v274
    %v868 = vunpack.c.h.b16 %v274
    %v869 = vunpack.c.l.b16 %v275
    %v870 = vunpack.c.h.b16 %v275
    %v871 = vunpack.c.l.b16 %v276
    %v872 = vunpack.c.h.b16 %v276
    %v873 = vunpack.c.l.b16 %v277
    %v874 = vunpack.c.h.b16 %v277
    %v875 = vunpack.c.l.b16 %v278
    %v876 = vunpack.c.h.b16 %v278
    %v877 = vunpack.c.l.b16 %v279
    %v878 = vunpack.c.h.b16 %v279
    %v879 = vunpack.c.l.b16 %v280
    %v880 = vunpack.c.h.b16 %v280
    %v881 = vunpack.c.l.b16 %v281
    %v882 = vunpack.c.h.b16 %v281
    %v883 = vunpack.c.l.b16 %v282
    %v884 = vunpack.c.h.b16 %v282
    %v885 = vunpack.c.l.b16 %v283
    %v886 = vunpack.c.h.b16 %v283
    %v887 = vunpack.c.l.b16 %v284
    %v888 = vunpack.c.h.b16 %v284
    %v889 = vunpack.c.l.b16 %v285
    %v890 = vunpack.c.h.b16 %v285
    %v891 = vunpack.c.l.b16 %v286
    %v892 = vunpack.c.h.b16 %v286
    %v893 = vunpack.c.l.b16 %v287
    %v894 = vunpack.c.h.b16 %v287
    %v895 = vunpack.c.l.b16 %v288
    %v896 = vunpack.c.h.b16 %v288
    %v897 = vunpack.c.l.b16 %v289
    %v898 = vunpack.c.h.b16 %v289
    %v899 = vunpack.c.l.b16 %v290
    %v900 = vunpack.c.h.b16 %v290
    %v901 = vunpack.c.l.b16 %v291
    %v902 = vunpack.c.h.b16 %v291
    %v903 = vunpack.c.l.b16 %v292
    %v904 = vunpack.c.h.b16 %v292
    %v905 = vunpack.c.l.b16 %v293
    %v906 = vunpack.c.h.b16 %v293
    %v907 = vunpack.c.l.b16 %v294
    %v908 = vunpack.c.h.b16 %v294
    %v909 = vunpack.c.l.b16 %v295
    %v910 = vunpack.c.h.b16 %v295
    %v911 = vunpack.c.l.b16 %v296
    %v912 = vunpack.c.h.b16 %v296
    %v913 = vunpack.c.l.b16 %v297
    %v914 = vunpack.c.h.b16 %v297
    %v915 = vunpack.c.l.b16 %v298
    %v916 = vunpack.c.h.b16 %v298
    %v917 = vunpack.c.l.b16 %v299
    %v918 = vunpack.c.h.b16 %v299
    %v919 = vunpack.c.l.b16 %v300
    %v920 = vunpack.c.h.b16 %v300
    %v921 = vunpack.c.l.b16 %v301
    %v922 = vunpack.c.h.b16 %v301
    %v923 = vunpack.c.l.b16 %v302
    %v924 = vunpack.c.h.b16 %v302
    %v925 = vunpack.c.l.b16 %v303
    %v926 = vunpack.c.h.b16 %v303
    %v927 = vunpack.c.l.b16 %v304
    %v928 = vunpack.c.h.b16 %v304
    %v929 = vunpack.c.l.b16 %v305
    %v930 = vunpack.c.h.b16 %v305
    %v931 = vunpack.c.l.b16 %v306
    %v932 = vunpack.c.h.b16 %v306
    %v933 = vunpack.c.l.b16 %v307
    %v934 = vunpack.c.h.b16 %v307
    %v935 = vunpack.c.l.b16 %v308
    %v936 = vunpack.c.h.b16 %v308
    %v937 = vunpack.c.l.b16 %v309
    %v938 = vunpack.c.h.b16 %v309
    %v939 = vunpack.c.l.b16 %v310
    %v940 = vunpack.c.h.b16 %v310
    %v941 = vunpack.c.l.b16 %v311
    %v942 = vunpack.c.h.b16 %v311
    %v943 = vunpack.c.l.b16 %v312
    %v944 = vunpack.c.h.b16 %v312
    %v945 = vunpack.c.l.b16 %v313
    %v946 = vunpack.c.h.b16 %v313
    %v947 = vunpack.c.l.b16 %v314
    %v948 = vunpack.c.h.b16 %v314
    %v949 = vunpack.c.l.b16 %v315
    %v950 = vunpack.c.h.b16 %v315
    %v951 = vunpack.c.l.b16 %v316
    %v952 = vunpack.c.h.b16 %v316
    %v953 = vunpack.c.l.b16 %v317
    %v954 = vunpack.c.h.b16 %v317
    %v955 = vunpack.c.l.b16 %v318
    %v956 = vunpack.c.h.b16 %v318
    %v957 = vunpack.c.l.b16 %v319
    %v958 = vunpack.c.h.b16 %v319
    %v959 = vunpack.c.l.b16 %v320
    %v960 = vunpack.c.h.b16 %v320
    %v961 = vunpack.c.l.b16 %v321
    %v962 = vunpack.c.h.b16 %v321
    %v963 = vunpack.c.l.b16 %v322
    %v964 = vunpack.c.h.b16 %v322
    %v965 = vunpack.c.l.b16 %v323
    %v966 = vunpack.c.h.b16 %v323
    %v967 = vunpack.c.l.b16 %v324
    %v968 = vunpack.c.h.b16 %v324
    %v969 = vunpack.c.l.b16 %v325
    %v970 = vunpack.c.h.b16 %v325
    %v971 = vunpack.c.l.b16 %v326
    %v972 = vunpack.c.h.b16 %v326
    %v973 = vunpack.c.l.b16 %v327
    %v974 = vunpack.c.h.b16 %v327
    %v975 = vpack.c.b16 %v603, %v591
    %v976 = vpack.c.b16 %v604, %v592
    %v977 = vpack.c.b16 %v605, %v593
    %v978 = vpack.c.b16 %v606, %v594
    %v979 = vpack.c.b16 %v607, %v595
    %v980 = vpack.c.b16 %v608, %v596
    %v981 = vpack.c.b16 %v609, %v597
    %v982 = vpack.c.b16 %v610, %v598
    %v983 = vpack.c.b16 %v611, %v599
    %v984 = vpack.c.b16 %v612, %v600
    %v985 = vpack.c.b16 %v613, %v601
    %v986 = vpack.c.b16 %v614, %v602
    %v987 = vpack.c.b16 %v627, %v615
    %v988 = vpack.c.b16 %v628, %v616
    %v989 = vpack.c.b16 %v629, %v617
    %v990 = vpack.c.b16 %v630, %v618
    %v991 = vpack.c.b16 %v631, %v619
    %v992 = vpack.c.b16 %v632, %v620
    %v993 = vpack.c.b16 %v633, %v621
    %v994 = vpack.c.b16 %v634, %v622
    %v995 = vpack.c.b16 %v635, %v623
    %v996 = vpack.c.b16 %v636, %v624
    %v997 = vpack.c.b16 %v637, %v625
    %v998 = vpack.c.b16 %v638, %v626
    %v999 = vpack.c.b16 %v651, %v639
    %v1000 = vpack.c.b16 %v652, %v640
    %v1001 = vpack.c.b16 %v653, %v641
    %v1002 = vpack.c.b16 %v654, %v642
    %v1003 = vpack.c.b16 %v655, %v643
    %v1004 = vpack.c.b16 %v656, %v644
    %v1005 = vpack.c.b16 %v657, %v645
    %v1006 = vpack.c.b16 %v658, %v646
    %v1007 = vpack.c.b16 %v659, %v647
    %v1008 = vpack.c.b16 %v660, %v648
    %v1009 = vpack.c.b16 %v661, %v649
    %v1010 = vpack.c.b16 %v662, %v650
    %v1011 = vpack.c.b16 %v675, %v663
    %v1012 = vpack.c.b16 %v676, %v664
    %v1013 = vpack.c.b16 %v677, %v665
    %v1014 = vpack.c.b16 %v678, %v666
    %v1015 = vpack.c.b16 %v679, %v667
    %v1016 = vpack.c.b16 %v680, %v668
    %v1017 = vpack.c.b16 %v681, %v669
    %v1018 = vpack.c.b16 %v682, %v670
    %v1019 = vpack.c.b16 %v683, %v671
    %v1020 = vpack.c.b16 %v684, %v672
    %v1021 = vpack.c.b16 %v685, %v673
    %v1022 = vpack.c.b16 %v686, %v674
    %v1023 = vpack.c.b16 %v699, %v687
    %v1024 = vpack.c.b16 %v700, %v688
    %v1025 = vpack.c.b16 %v701, %v689
    %v1026 = vpack.c.b16 %v702, %v690
    %v1027 = vpack.c.b16 %v703, %v691
    %v1028 = vpack.c.b16 %v704, %v692
    %v1029 = vpack.c.b16 %v705, %v693
    %v1030 = vpack.c.b16 %v706, %v694
    %v1031 = vpack.c.b16 %v707, %v695
    %v1032 = vpack.c.b16 %v708, %v696
    %v1033 = vpack.c.b16 %v709, %v697
    %v1034 = vpack.c.b16 %v710, %v698
    %v1035 = vpack.c.b16 %v723, %v711
    %v1036 = vpack.c.b16 %v724, %v712
    %v1037 = vpack.c.b16 %v725, %v713
    %v1038 = vpack.c.b16 %v726, %v714
    %v1039 = vpack.c.b16 %v727, %v715
    %v1040 = vpack.c.b16 %v728, %v716
    %v1041 = vpack.c.b16 %v729, %v717
    %v1042 = vpack.c.b16 %v730, %v718
    %v1043 = vpack.c.b16 %v731, %v719
    %v1044 = vpack.c.b16 %v732, %v720
    %v1045 = vpack.c.b16 %v733, %v721
    %v1046 = vpack.c.b16 %v734, %v722
    %v1047 = vpack.c.b16 %v747, %v735
    %v1048 = vpack.c.b16 %v748, %v736
    %v1049 = vpack.c.b16 %v749, %v737
    %v1050 = vpack.c.b16 %v750, %v738
    %v1051 = vpack.c.b16 %v751, %v739
    %v1052 = vpack.c.b16 %v752, %v740
    %v1053 = vpack.c.b16 %v753, %v741
    %v1054 = vpack.c.b16 %v754, %v742
    %v1055 = vpack.c.b16 %v755, %v743
    %v1056 = vpack.c.b16 %v756, %v744
    %v1057 = vpack.c.b16 %v757, %v745
    %v1058 = vpack.c.b16 %v758, %v746
    %v1059 = vpack.c.b16 %v771, %v759
    %v1060 = vpack.c.b16 %v772, %v760
    %v1061 = vpack.c.b16 %v773, %v761
    %v1062 = vpack.c.b16 %v774, %v762
    %v1063 = vpack.c.b16 %v775, %v763
    %v1064 = vpack.c.b16 %v776, %v764
    %v1065 = vpack.c.b16 %v777, %v765
    %v1066 = vpack.c.b16 %v778, %v766
    %v1067 = vpack.c.b16 %v779, %v767
    %v1068 = vpack.c.b16 %v780, %v768
    %v1069 = vpack.c.b16 %v781, %v769
    %v1070 = vpack.c.b16 %v782, %v770
    %v1071 = vpack.c.b16 %v795, %v783
    %v1072 = vpack.c.b16 %v796, %v784
    %v1073 = vpack.c.b16 %v797, %v785
    %v1074 = vpack.c.b16 %v798, %v786
    %v1075 = vpack.c.b16 %v799, %v787
    %v1076 = vpack.c.b16 %v800, %v788
    %v1077 = vpack.c.b16 %v801, %v789
    %v1078 = vpack.c.b16 %v802, %v790
    %v1079 = vpack.c.b16 %v803, %v791
    %v1080 = vpack.c.b16 %v804, %v792
    %v1081 = vpack.c.b16 %v805, %v793
    %v1082 = vpack.c.b16 %v806, %v794
    %v1083 = vpack.c.b16 %v819, %v807
    %v1084 = vpack.c.b16 %v820, %v808
    %v1085 = vpack.c.b16 %v821, %v809
    %v1086 = vpack.c.b16 %v822, %v810
    %v1087 = vpack.c.b16 %v823, %v811
    %v1088 = vpack.c.b16 %v824, %v812
    %v1089 = vpack.c.b16 %v825, %v813
    %v1090 = vpack.c.b16 %v826, %v814
    %v1091 = vpack.c.b16 %v827, %v815
    %v1092 = vpack.c.b16 %v828, %v816
    %v1093 = vpack.c.b16 %v829, %v817
    %v1094 = vpack.c.b16 %v830, %v818
    %v1095 = vpack.c.b16 %v843, %v831
    %v1096 = vpack.c.b16 %v844, %v832
    %v1097 = vpack.c.b16 %v845, %v833
    %v1098 = vpack.c.b16 %v846, %v834
    %v1099 = vpack.c.b16 %v847, %v835
    %v1100 = vpack.c.b16 %v848, %v836
    %v1101 = vpack.c.b16 %v849, %v837
    %v1102 = vpack.c.b16 %v850, %v838
    %v1103 = vpack.c.b16 %v851, %v839
    %v1104 = vpack.c.b16 %v852, %v840
    %v1105 = vpack.c.b16 %v853, %v841
    %v1106 = vpack.c.b16 %v854, %v842
    %v1107 = vpack.c.b16 %v867, %v855
    %v1108 = vpack.c.b16 %v868, %v856
    %v1109 = vpack.c.b16 %v869, %v857
    %v1110 = vpack.c.b16 %v870, %v858
    %v1111 = vpack.c.b16 %v871, %v859
    %v1112 = vpack.c.b16 %v872, %v860
    %v1113 = vpack.c.b16 %v873, %v861
    %v1114 = vpack.c.b16 %v874, %v862
    %v1115 = vpack.c.b16 %v875, %v863
    %v1116 = vpack.c.b16 %v876, %v864
    %v1117 = vpack.c.b16 %v877, %v865
    %v1118 = vpack.c.b16 %v878, %v866
    %v1119 = vpack.c.b16 %v891, %v879
    %v1120 = vpack.c.b16 %v892, %v880
    %v1121 = vpack.c.b16 %v893, %v881
    %v1122 = vpack.c.b16 %v894, %v882
    %v1123 = vpack.c.b16 %v895, %v883
    %v1124 = vpack.c.b16 %v896, %v884
    %v1125 = vpack.c.b16 %v897, %v885
    %v1126 = vpack.c.b16 %v898, %v886
    %v1127 = vpack.c.b16 %v899, %v887
    %v1128 = vpack.c.b16 %v900, %v888
    %v1129 = vpack.c.b16 %v901, %v889
    %v1130 = vpack.c.b16 %v902, %v890
    %v1131 = vpack.c.b16 %v915, %v903
    %v1132 = vpack.c.b16 %v916, %v904
    %v1133 = vpack.c.b16 %v917, %v905
    %v1134 = vpack.c.b16 %v918, %v906
    %v1135 = vpack.c.b16 %v919, %v907
    %v1136 = vpack.c.b16 %v920, %v908
    %v1137 = vpack.c.b16 %v921, %v909
    %v1138 = vpack.c.b16 %v922, %v910
    %v1139 = vpack.c.b16 %v923, %v911
    %v1140 = vpack.c.b16 %v924, %v912
    %v1141 = vpack.c.b16 %v925, %v913
    %v1142 = vpack.c.b16 %v926, %v914
    %v1143 = vpack.c.b16 %v939, %v927
    %v1144 = vpack.c.b16 %v940, %v928
    %v1145 = vpack.c.b16 %v941, %v929
    %v1146 = vpack.c.b16 %v942, %v930
    %v1147 = vpack.c.b16 %v943, %v931
    %v1148 = vpack.c.b16 %v944, %v932
    %v1149 = vpack.c.b16 %v945, %v933
    %v1150 = vpack.c.b16 %v946, %v934
    %v1151 = vpack.c.b16 %v947, %v935
    %v1152 = vpack.c.b16 %v948, %v936
    %v1153 = vpack.c.b16 %v949, %v937
    %v1154 = vpack.c.b16 %v950, %v938
    %v1155 = vpack.c.b16 %v963, %v951
    %v1156 = vpack.c.b16 %v964, %v952
    %v1157 = vpack.c.b16 %v965, %v953
    %v1158 = vpack.c.b16 %v966, %v954
    %v1159 = vpack.c.b16 %v967, %v955
    %v1160 = vpack.c.b16 %v968, %v956
    %v1161 = vpack.c.b16 %v969, %v957
    %v1162 = vpack.c.b16 %v970, %v958
    %v1163 = vpack.c.b16 %v971, %v959
    %v1164 = vpack.c.b16 %v972, %v960
    %v1165 = vpack.c.b16 %v973, %v961
    %v1166 = vpack.c.b16 %v974, %v962
    %1359 = vmatprep.subr.bf16.mxu0 %v976
    %1360 = vmatpush1.bf16.msra.mxu0 %v975
    %1361 = vmatprep.subr.bf16.mxu0 %v988
    %1362 = vmatpush1.bf16.msra.mxu0 %v987
    %1363 = vmatprep.subr.bf16.mxu0 %v1000
    %1364 = vmatpush1.bf16.msra.mxu0 %v999
    %1365 = vmatprep.subr.bf16.mxu0 %v1012
    %1366 = vmatpush1.bf16.msra.mxu0 %v1011
    %1367 = vmatprep.subr.bf16.mxu0 %v1024
    %1368 = vmatpush1.bf16.msra.mxu0 %v1023
    %1369 = vmatprep.subr.bf16.mxu0 %v1036
    %1370 = vmatpush1.bf16.msra.mxu0 %v1035
    %1371 = vmatprep.subr.bf16.mxu0 %v1048
    %1372 = vmatpush1.bf16.msra.mxu0 %v1047
    %1373 = vmatprep.subr.bf16.mxu0 %v1060
    %1374 = vmatpush1.bf16.msra.mxu0 %v1059
    %1375 = vmatprep.subr.bf16.mxu0 %v1072
    %1376 = vmatpush1.bf16.msra.mxu0 %v1071
    %1377 = vmatprep.subr.bf16.mxu0 %v1084
    %1378 = vmatpush1.bf16.msra.mxu0 %v1083
    %1379 = vmatprep.subr.bf16.mxu0 %v1096
    %1380 = vmatpush1.bf16.msra.mxu0 %v1095
    %1381 = vmatprep.subr.bf16.mxu0 %v1108
    %1382 = vmatpush1.bf16.msra.mxu0 %v1107
    %1383 = vmatprep.subr.bf16.mxu0 %v1120
    %1384 = vmatpush1.bf16.msra.mxu0 %v1119
    %1385 = vmatprep.subr.bf16.mxu0 %v1132
    %1386 = vmatpush1.bf16.msra.mxu0 %v1131
    %1387 = vmatprep.subr.bf16.mxu0 %v1144
    %1388 = vmatpush1.bf16.msra.mxu0 %v1143
    %1389 = vmatprep.subr.bf16.mxu0 %v1156
    %1390 = vmatpush1.bf16.msra.mxu0 %v1155
    %1391 = vmatprep.mubr.bf16.mxu0 %v396
    %1392 = vmatmul.mubr.bf16.gmra.mrb[0].mxu0 %v395
    %v1393 = vpop.f32.mrb[0].mxu0
    %v1394 = vadd.f32 %v335, %v1393
    %v1395 = vpop.f32.mrb[0].mxu0
    %v1396 = vadd.f32 %v339, %v1395
    %v1397 = vpop.f32.mrb[0].mxu0
    %v1398 = vpop.f32.mrb[0].mxu0
    %1399 = vdwg.mxu0
    %1400 = vmatprep.subr.bf16.mxu0 %v978
    %1401 = vmatpush1.bf16.msra.mxu0 %v977
    %1402 = vmatprep.subr.bf16.mxu0 %v990
    %1403 = vmatpush1.bf16.msra.mxu0 %v989
    %1404 = vmatprep.subr.bf16.mxu0 %v1002
    %1405 = vmatpush1.bf16.msra.mxu0 %v1001
    %1406 = vmatprep.subr.bf16.mxu0 %v1014
    %1407 = vmatpush1.bf16.msra.mxu0 %v1013
    %1408 = vmatprep.subr.bf16.mxu0 %v1026
    %1409 = vmatpush1.bf16.msra.mxu0 %v1025
    %1410 = vmatprep.subr.bf16.mxu0 %v1038
    %1411 = vmatpush1.bf16.msra.mxu0 %v1037
    %1412 = vmatprep.subr.bf16.mxu0 %v1050
    %1413 = vmatpush1.bf16.msra.mxu0 %v1049
    %1414 = vmatprep.subr.bf16.mxu0 %v1062
    %1415 = vmatpush1.bf16.msra.mxu0 %v1061
    %1416 = vmatprep.subr.bf16.mxu0 %v1074
    %1417 = vmatpush1.bf16.msra.mxu0 %v1073
    %1418 = vmatprep.subr.bf16.mxu0 %v1086
    %1419 = vmatpush1.bf16.msra.mxu0 %v1085
    %1420 = vmatprep.subr.bf16.mxu0 %v1098
    %1421 = vmatpush1.bf16.msra.mxu0 %v1097
    %1422 = vmatprep.subr.bf16.mxu0 %v1110
    %1423 = vmatpush1.bf16.msra.mxu0 %v1109
    %1424 = vmatprep.subr.bf16.mxu0 %v1122
    %1425 = vmatpush1.bf16.msra.mxu0 %v1121
    %1426 = vmatprep.subr.bf16.mxu0 %v1134
    %1427 = vmatpush1.bf16.msra.mxu0 %v1133
    %1428 = vmatprep.subr.bf16.mxu0 %v1146
    %1429 = vmatpush1.bf16.msra.mxu0 %v1145
    %1430 = vmatprep.subr.bf16.mxu0 %v1158
    %1431 = vmatpush1.bf16.msra.mxu0 %v1157
    %1432 = vmatprep.mubr.bf16.mxu0 %v396
    %1433 = vmatmul.mubr.bf16.gmra.mrb[0].mxu0 %v395
    %v1434 = vpop.f32.mrb[0].mxu0
    %v1435 = vadd.f32 %v343, %v1434
    %v1436 = vpop.f32.mrb[0].mxu0
    %v1437 = vadd.f32 %v347, %v1436
    %v1438 = vpop.f32.mrb[0].mxu0
    %v1439 = vpop.f32.mrb[0].mxu0
    %1440 = vdwg.mxu0
    %1441 = vmatprep.subr.bf16.mxu0 %v980
    %1442 = vmatpush1.bf16.msra.mxu0 %v979
    %1443 = vmatprep.subr.bf16.mxu0 %v992
    %1444 = vmatpush1.bf16.msra.mxu0 %v991
    %1445 = vmatprep.subr.bf16.mxu0 %v1004
    %1446 = vmatpush1.bf16.msra.mxu0 %v1003
    %1447 = vmatprep.subr.bf16.mxu0 %v1016
    %1448 = vmatpush1.bf16.msra.mxu0 %v1015
    %1449 = vmatprep.subr.bf16.mxu0 %v1028
    %1450 = vmatpush1.bf16.msra.mxu0 %v1027
    %1451 = vmatprep.subr.bf16.mxu0 %v1040
    %1452 = vmatpush1.bf16.msra.mxu0 %v1039
    %1453 = vmatprep.subr.bf16.mxu0 %v1052
    %1454 = vmatpush1.bf16.msra.mxu0 %v1051
    %1455 = vmatprep.subr.bf16.mxu0 %v1064
    %1456 = vmatpush1.bf16.msra.mxu0 %v1063
    %1457 = vmatprep.subr.bf16.mxu0 %v1076
    %1458 = vmatpush1.bf16.msra.mxu0 %v1075
    %1459 = vmatprep.subr.bf16.mxu0 %v1088
    %1460 = vmatpush1.bf16.msra.mxu0 %v1087
    %1461 = vmatprep.subr.bf16.mxu0 %v1100
    %1462 = vmatpush1.bf16.msra.mxu0 %v1099
    %1463 = vmatprep.subr.bf16.mxu0 %v1112
    %1464 = vmatpush1.bf16.msra.mxu0 %v1111
    %1465 = vmatprep.subr.bf16.mxu0 %v1124
    %1466 = vmatpush1.bf16.msra.mxu0 %v1123
    %1467 = vmatprep.subr.bf16.mxu0 %v1136
    %1468 = vmatpush1.bf16.msra.mxu0 %v1135
    %1469 = vmatprep.subr.bf16.mxu0 %v1148
    %1470 = vmatpush1.bf16.msra.mxu0 %v1147
    %1471 = vmatprep.subr.bf16.mxu0 %v1160
    %1472 = vmatpush1.bf16.msra.mxu0 %v1159
    %1473 = vmatprep.mubr.bf16.mxu0 %v396
    %1474 = vmatmul.mubr.bf16.gmra.mrb[0].mxu0 %v395
    %v1475 = vpop.f32.mrb[0].mxu0
    %v1476 = vadd.f32 %v351, %v1475
    %v1477 = vpop.f32.mrb[0].mxu0
    %v1478 = vadd.f32 %v355, %v1477
    %v1479 = vpop.f32.mrb[0].mxu0
    %v1480 = vpop.f32.mrb[0].mxu0
    %1481 = vdwg.mxu0
    %1482 = vmatprep.subr.bf16.mxu0 %v982
    %1483 = vmatpush1.bf16.msra.mxu0 %v981
    %1484 = vmatprep.subr.bf16.mxu0 %v994
    %1485 = vmatpush1.bf16.msra.mxu0 %v993
    %1486 = vmatprep.subr.bf16.mxu0 %v1006
    %1487 = vmatpush1.bf16.msra.mxu0 %v1005
    %1488 = vmatprep.subr.bf16.mxu0 %v1018
    %1489 = vmatpush1.bf16.msra.mxu0 %v1017
    %1490 = vmatprep.subr.bf16.mxu0 %v1030
    %1491 = vmatpush1.bf16.msra.mxu0 %v1029
    %1492 = vmatprep.subr.bf16.mxu0 %v1042
    %1493 = vmatpush1.bf16.msra.mxu0 %v1041
    %1494 = vmatprep.subr.bf16.mxu0 %v1054
    %1495 = vmatpush1.bf16.msra.mxu0 %v1053
    %1496 = vmatprep.subr.bf16.mxu0 %v1066
    %1497 = vmatpush1.bf16.msra.mxu0 %v1065
    %1498 = vmatprep.subr.bf16.mxu0 %v1078
    %1499 = vmatpush1.bf16.msra.mxu0 %v1077
    %1500 = vmatprep.subr.bf16.mxu0 %v1090
    %1501 = vmatpush1.bf16.msra.mxu0 %v1089
    %1502 = vmatprep.subr.bf16.mxu0 %v1102
    %1503 = vmatpush1.bf16.msra.mxu0 %v1101
    %1504 = vmatprep.subr.bf16.mxu0 %v1114
    %1505 = vmatpush1.bf16.msra.mxu0 %v1113
    %1506 = vmatprep.subr.bf16.mxu0 %v1126
    %1507 = vmatpush1.bf16.msra.mxu0 %v1125
    %1508 = vmatprep.subr.bf16.mxu0 %v1138
    %1509 = vmatpush1.bf16.msra.mxu0 %v1137
    %1510 = vmatprep.subr.bf16.mxu0 %v1150
    %1511 = vmatpush1.bf16.msra.mxu0 %v1149
    %1512 = vmatprep.subr.bf16.mxu0 %v1162
    %1513 = vmatpush1.bf16.msra.mxu0 %v1161
    %1514 = vmatprep.mubr.bf16.mxu0 %v396
    %1515 = vmatmul.mubr.bf16.gmra.mrb[0].mxu0 %v395
    %v1516 = vpop.f32.mrb[0].mxu0
    %v1517 = vadd.f32 %v359, %v1516
    %v1518 = vpop.f32.mrb[0].mxu0
    %v1519 = vadd.f32 %v363, %v1518
    %v1520 = vpop.f32.mrb[0].mxu0
    %v1521 = vpop.f32.mrb[0].mxu0
    %1522 = vdwg.mxu0
    %1523 = vmatprep.subr.bf16.mxu0 %v984
    %1524 = vmatpush1.bf16.msra.mxu0 %v983
    %1525 = vmatprep.subr.bf16.mxu0 %v996
    %1526 = vmatpush1.bf16.msra.mxu0 %v995
    %1527 = vmatprep.subr.bf16.mxu0 %v1008
    %1528 = vmatpush1.bf16.msra.mxu0 %v1007
    %1529 = vmatprep.subr.bf16.mxu0 %v1020
    %1530 = vmatpush1.bf16.msra.mxu0 %v1019
    %1531 = vmatprep.subr.bf16.mxu0 %v1032
    %1532 = vmatpush1.bf16.msra.mxu0 %v1031
    %1533 = vmatprep.subr.bf16.mxu0 %v1044
    %1534 = vmatpush1.bf16.msra.mxu0 %v1043
    %1535 = vmatprep.subr.bf16.mxu0 %v1056
    %1536 = vmatpush1.bf16.msra.mxu0 %v1055
    %1537 = vmatprep.subr.bf16.mxu0 %v1068
    %1538 = vmatpush1.bf16.msra.mxu0 %v1067
    %1539 = vmatprep.subr.bf16.mxu0 %v1080
    %1540 = vmatpush1.bf16.msra.mxu0 %v1079
    %1541 = vmatprep.subr.bf16.mxu0 %v1092
    %1542 = vmatpush1.bf16.msra.mxu0 %v1091
    %1543 = vmatprep.subr.bf16.mxu0 %v1104
    %1544 = vmatpush1.bf16.msra.mxu0 %v1103
    %1545 = vmatprep.subr.bf16.mxu0 %v1116
    %1546 = vmatpush1.bf16.msra.mxu0 %v1115
    %1547 = vmatprep.subr.bf16.mxu0 %v1128
    %1548 = vmatpush1.bf16.msra.mxu0 %v1127
    %1549 = vmatprep.subr.bf16.mxu0 %v1140
    %1550 = vmatpush1.bf16.msra.mxu0 %v1139
    %1551 = vmatprep.subr.bf16.mxu0 %v1152
    %1552 = vmatpush1.bf16.msra.mxu0 %v1151
    %1553 = vmatprep.subr.bf16.mxu0 %v1164
    %1554 = vmatpush1.bf16.msra.mxu0 %v1163
    %1555 = vmatprep.mubr.bf16.mxu0 %v396
    %1556 = vmatmul.mubr.bf16.gmra.mrb[0].mxu0 %v395
    %v1557 = vpop.f32.mrb[0].mxu0
    %v1558 = vadd.f32 %v367, %v1557
    %v1559 = vpop.f32.mrb[0].mxu0
    %v1560 = vadd.f32 %v371, %v1559
    %v1561 = vpop.f32.mrb[0].mxu0
    %v1562 = vpop.f32.mrb[0].mxu0
    %1563 = vdwg.mxu0
    %1564 = vmatprep.subr.bf16.mxu0 %v986
    %1565 = vmatpush1.bf16.msra.mxu0 %v985
    %1566 = vmatprep.subr.bf16.mxu0 %v998
    %1567 = vmatpush1.bf16.msra.mxu0 %v997
    %1568 = vmatprep.subr.bf16.mxu0 %v1010
    %1569 = vmatpush1.bf16.msra.mxu0 %v1009
    %1570 = vmatprep.subr.bf16.mxu0 %v1022
    %1571 = vmatpush1.bf16.msra.mxu0 %v1021
    %1572 = vmatprep.subr.bf16.mxu0 %v1034
    %1573 = vmatpush1.bf16.msra.mxu0 %v1033
    %1574 = vmatprep.subr.bf16.mxu0 %v1046
    %1575 = vmatpush1.bf16.msra.mxu0 %v1045
    %1576 = vmatprep.subr.bf16.mxu0 %v1058
    %1577 = vmatpush1.bf16.msra.mxu0 %v1057
    %1578 = vmatprep.subr.bf16.mxu0 %v1070
    %1579 = vmatpush1.bf16.msra.mxu0 %v1069
    %1580 = vmatprep.subr.bf16.mxu0 %v1082
    %1581 = vmatpush1.bf16.msra.mxu0 %v1081
    %1582 = vmatprep.subr.bf16.mxu0 %v1094
    %1583 = vmatpush1.bf16.msra.mxu0 %v1093
    %1584 = vmatprep.subr.bf16.mxu0 %v1106
    %1585 = vmatpush1.bf16.msra.mxu0 %v1105
    %1586 = vmatprep.subr.bf16.mxu0 %v1118
    %1587 = vmatpush1.bf16.msra.mxu0 %v1117
    %1588 = vmatprep.subr.bf16.mxu0 %v1130
    %1589 = vmatpush1.bf16.msra.mxu0 %v1129
    %1590 = vmatprep.subr.bf16.mxu0 %v1142
    %1591 = vmatpush1.bf16.msra.mxu0 %v1141
    %1592 = vmatprep.subr.bf16.mxu0 %v1154
    %1593 = vmatpush1.bf16.msra.mxu0 %v1153
    %1594 = vmatprep.subr.bf16.mxu0 %v1166
    %1595 = vmatpush1.bf16.msra.mxu0 %v1165
    %1596 = vmatprep.mubr.bf16.mxu0 %v396
    %1597 = vmatmul.mubr.bf16.gmra.mrb[0].mxu0 %v395
    %v1598 = vpop.f32.mrb[0].mxu0
    %v1599 = vadd.f32 %v375, %v1598
    %v1600 = vpop.f32.mrb[0].mxu0
    %v1601 = vadd.f32 %v379, %v1600
    %v1602 = vpop.f32.mrb[0].mxu0
    %v1603 = vpop.f32.mrb[0].mxu0
    %1604 = vdwg.mxu0
    %v1605 = vmax.f32 %v1394, 0.0
    %v1606 = vmax.f32 %v1396, 0.0
    %v1607 = vmax.f32 %v1435, 0.0
    %v1608 = vmax.f32 %v1437, 0.0
    %v1609 = vmax.f32 %v1476, 0.0
    %v1610 = vmax.f32 %v1478, 0.0
    %v1611 = vmax.f32 %v1517, 0.0
    %v1612 = vmax.f32 %v1519, 0.0
    %v1613 = vmax.f32 %v1558, 0.0
    %v1614 = vmax.f32 %v1560, 0.0
    %v1615 = vmax.f32 %v1599, 0.0
    %v1616 = vmax.f32 %v1601, 0.0
    %v1617 = vpack.c.bf16 %v1605, %v1605
    %v1618 = vpack.c.bf16 %v1606, %v1606
    %v1619 = vpack.c.bf16 %v1607, %v1607
    %v1620 = vpack.c.bf16 %v1608, %v1608
    %v1621 = vpack.c.bf16 %v1609, %v1609
    %v1622 = vpack.c.bf16 %v1610, %v1610
    %v1623 = vpack.c.bf16 %v1611, %v1611
    %v1624 = vpack.c.bf16 %v1612, %v1612
    %v1625 = vpack.c.bf16 %v1613, %v1613
    %v1626 = vpack.c.bf16 %v1614, %v1614
    %v1627 = vpack.c.bf16 %v1615, %v1615
    %v1628 = vpack.c.bf16 %v1616, %v1616
    %v1629 = vld [vmem:[#allocation7] sm:$0xf]
    %v1630 = vld [vmem:[#allocation7 + $0x4] sm:$0xf]
    %v1631 = vld [vmem:[#allocation7 + $0x8] sm:$0xf]
    %v1632 = vld [vmem:[#allocation7 + $0xc] sm:$0xf]
    %v1633 = vld [vmem:[#allocation7 + $0x10] sm:$0xf]
    %v1634 = vld [vmem:[#allocation7 + $0x14] sm:$0xf]
    %v1635 = vld [vmem:[#allocation7 + $0x18] sm:$0xf]
    %v1636 = vld [vmem:[#allocation7 + $0x1c] sm:$0xf]
    %v1637 = vld [vmem:[#allocation7 + $0x20] sm:$0xf]
    %v1638 = vld [vmem:[#allocation7 + $0x24] sm:$0xf]
    %v1639 = vld [vmem:[#allocation7 + $0x28] sm:$0xf]
    %v1640 = vld [vmem:[#allocation7 + $0x2c] sm:$0xf]
    %v1641 = vld [vmem:[#allocation7 + $0x30] sm:$0xf]
    %v1642 = vld [vmem:[#allocation7 + $0x34] sm:$0xf]
    %v1643 = vld [vmem:[#allocation7 + $0x38] sm:$0xf]
    %v1644 = vld [vmem:[#allocation7 + $0x3c] sm:$0xf]
    %v1645 = vld [vmem:[#allocation7 + $0x40] sm:$0xf]
    %v1646 = vld [vmem:[#allocation7 + $0x44] sm:$0xf]
    %v1647 = vld [vmem:[#allocation7 + $0x48] sm:$0xf]
    %v1648 = vld [vmem:[#allocation7 + $0x4c] sm:$0xf]
    %v1649 = vld [vmem:[#allocation7 + $0x50] sm:$0xf]
    %v1650 = vld [vmem:[#allocation7 + $0x54] sm:$0xf]
    %v1651 = vld [vmem:[#allocation7 + $0x58] sm:$0xf]
    %v1652 = vld [vmem:[#allocation7 + $0x5c] sm:$0xf]
    %v1653 = vld [vmem:[#allocation7 + $0x60] sm:$0xf]
    %v1654 = vld [vmem:[#allocation7 + $0x64] sm:$0xf]
    %v1655 = vld [vmem:[#allocation7 + $0x68] sm:$0xf]
    %v1656 = vld [vmem:[#allocation7 + $0x6c] sm:$0xf]
    %v1657 = vld [vmem:[#allocation7 + $0x70] sm:$0xf]
    %v1658 = vld [vmem:[#allocation7 + $0x74] sm:$0xf]
    %v1659 = vld [vmem:[#allocation7 + $0x78] sm:$0xf]
    %v1660 = vld [vmem:[#allocation7 + $0x7c] sm:$0xf]
    %v1661 = vld [vmem:[#allocation7 + $0x80] sm:$0xf]
    %v1662 = vld [vmem:[#allocation7 + $0x84] sm:$0xf]
    %v1663 = vld [vmem:[#allocation7 + $0x88] sm:$0xf]
    %v1664 = vld [vmem:[#allocation7 + $0x8c] sm:$0xf]
    %v1665 = vld [vmem:[#allocation7 + $0x90] sm:$0xf]
    %v1666 = vld [vmem:[#allocation7 + $0x94] sm:$0xf]
    %v1667 = vld [vmem:[#allocation7 + $0x98] sm:$0xf]
    %v1668 = vld [vmem:[#allocation7 + $0x9c] sm:$0xf]
    %v1669 = vld [vmem:[#allocation7 + $0xa0] sm:$0xf]
    %v1670 = vld [vmem:[#allocation7 + $0xa4] sm:$0xf]
    %v1671 = vld [vmem:[#allocation7 + $0xa8] sm:$0xf]
    %v1672 = vld [vmem:[#allocation7 + $0xac] sm:$0xf]
    %v1673 = vld [vmem:[#allocation7 + $0xb0] sm:$0xf]
    %v1674 = vld [vmem:[#allocation7 + $0xb4] sm:$0xf]
    %v1675 = vld [vmem:[#allocation7 + $0xb8] sm:$0xf]
    %v1676 = vld [vmem:[#allocation7 + $0xbc] sm:$0xf]
    %v1677 = vld [vmem:[#allocation7 + $0xc0] sm:$0xf]
    %v1678 = vld [vmem:[#allocation7 + $0xc4] sm:$0xf]
    %v1679 = vld [vmem:[#allocation7 + $0xc8] sm:$0xf]
    %v1680 = vld [vmem:[#allocation7 + $0xcc] sm:$0xf]
    %v1681 = vld [vmem:[#allocation7 + $0xd0] sm:$0xf]
    %v1682 = vld [vmem:[#allocation7 + $0xd4] sm:$0xf]
    %v1683 = vld [vmem:[#allocation7 + $0xd8] sm:$0xf]
    %v1684 = vld [vmem:[#allocation7 + $0xdc] sm:$0xf]
    %v1685 = vld [vmem:[#allocation7 + $0xe0] sm:$0xf]
    %v1686 = vld [vmem:[#allocation7 + $0xe4] sm:$0xf]
    %v1687 = vld [vmem:[#allocation7 + $0xe8] sm:$0xf]
    %v1688 = vld [vmem:[#allocation7 + $0xec] sm:$0xf]
    %v1689 = vld [vmem:[#allocation7 + $0xf0] sm:$0xf]
    %v1690 = vld [vmem:[#allocation7 + $0xf4] sm:$0xf]
    %v1691 = vld [vmem:[#allocation7 + $0xf8] sm:$0xf]
    %v1692 = vld [vmem:[#allocation7 + $0xfc] sm:$0xf]
    %v1693 = vld [vmem:[#allocation7 + $0x100] sm:$0xf]
    %v1694 = vld [vmem:[#allocation7 + $0x104] sm:$0xf]
    %v1695 = vld [vmem:[#allocation7 + $0x108] sm:$0xf]
    %v1696 = vld [vmem:[#allocation7 + $0x10c] sm:$0xf]
    %v1697 = vld [vmem:[#allocation7 + $0x110] sm:$0xf]
    %v1698 = vld [vmem:[#allocation7 + $0x114] sm:$0xf]
    %v1699 = vld [vmem:[#allocation7 + $0x118] sm:$0xf]
    %v1700 = vld [vmem:[#allocation7 + $0x11c] sm:$0xf]
    %v1701 = vld [vmem:[#allocation7 + $0x120] sm:$0xf]
    %v1702 = vld [vmem:[#allocation7 + $0x124] sm:$0xf]
    %v1703 = vld [vmem:[#allocation7 + $0x128] sm:$0xf]
    %v1704 = vld [vmem:[#allocation7 + $0x12c] sm:$0xf]
    %v1705 = vld [vmem:[#allocation7 + $0x130] sm:$0xf]
    %v1706 = vld [vmem:[#allocation7 + $0x134] sm:$0xf]
    %v1707 = vld [vmem:[#allocation7 + $0x138] sm:$0xf]
    %v1708 = vld [vmem:[#allocation7 + $0x13c] sm:$0xf]
    %v1709 = vld [vmem:[#allocation7 + $0x140] sm:$0xf]
    %v1710 = vld [vmem:[#allocation7 + $0x144] sm:$0xf]
    %v1711 = vld [vmem:[#allocation7 + $0x148] sm:$0xf]
    %v1712 = vld [vmem:[#allocation7 + $0x14c] sm:$0xf]
    %v1713 = vld [vmem:[#allocation7 + $0x150] sm:$0xf]
    %v1714 = vld [vmem:[#allocation7 + $0x154] sm:$0xf]
    %v1715 = vld [vmem:[#allocation7 + $0x158] sm:$0xf]
    %v1716 = vld [vmem:[#allocation7 + $0x15c] sm:$0xf]
    %v1717 = vld [vmem:[#allocation7 + $0x160] sm:$0xf]
    %v1718 = vld [vmem:[#allocation7 + $0x164] sm:$0xf]
    %v1719 = vld [vmem:[#allocation7 + $0x168] sm:$0xf]
    %v1720 = vld [vmem:[#allocation7 + $0x16c] sm:$0xf]
    %v1721 = vld [vmem:[#allocation7 + $0x170] sm:$0xf]
    %v1722 = vld [vmem:[#allocation7 + $0x174] sm:$0xf]
    %v1723 = vld [vmem:[#allocation7 + $0x178] sm:$0xf]
    %v1724 = vld [vmem:[#allocation7 + $0x17c] sm:$0xf]
    %v1725 = vld [vmem:[#allocation7 + $0x180] sm:$0xf]
    %v1726 = vld [vmem:[#allocation7 + $0x184] sm:$0xf]
    %v1727 = vld [vmem:[#allocation7 + $0x188] sm:$0xf]
    %v1728 = vld [vmem:[#allocation7 + $0x18c] sm:$0xf]
    %v1729 = vld [vmem:[#allocation7 + $0x190] sm:$0xf]
    %v1730 = vld [vmem:[#allocation7 + $0x194] sm:$0xf]
    %v1731 = vld [vmem:[#allocation7 + $0x198] sm:$0xf]
    %v1732 = vld [vmem:[#allocation7 + $0x19c] sm:$0xf]
    %v1733 = vld [vmem:[#allocation7 + $0x1a0] sm:$0xf]
    %v1734 = vld [vmem:[#allocation7 + $0x1a4] sm:$0xf]
    %v1735 = vld [vmem:[#allocation7 + $0x1a8] sm:$0xf]
    %v1736 = vld [vmem:[#allocation7 + $0x1ac] sm:$0xf]
    %v1737 = vld [vmem:[#allocation7 + $0x1b0] sm:$0xf]
    %v1738 = vld [vmem:[#allocation7 + $0x1b4] sm:$0xf]
    %v1739 = vld [vmem:[#allocation7 + $0x1b8] sm:$0xf]
    %v1740 = vld [vmem:[#allocation7 + $0x1bc] sm:$0xf]
    %v1741 = vld [vmem:[#allocation7 + $0x1c0] sm:$0xf]
    %v1742 = vld [vmem:[#allocation7 + $0x1c4] sm:$0xf]
    %v1743 = vld [vmem:[#allocation7 + $0x1c8] sm:$0xf]
    %v1744 = vld [vmem:[#allocation7 + $0x1cc] sm:$0xf]
    %v1745 = vld [vmem:[#allocation7 + $0x1d0] sm:$0xf]
    %v1746 = vld [vmem:[#allocation7 + $0x1d4] sm:$0xf]
    %v1747 = vld [vmem:[#allocation7 + $0x1d8] sm:$0xf]
    %v1748 = vld [vmem:[#allocation7 + $0x1dc] sm:$0xf]
    %v1749 = vld [vmem:[#allocation7 + $0x1e0] sm:$0xf]
    %v1750 = vld [vmem:[#allocation7 + $0x1e4] sm:$0xf]
    %v1751 = vld [vmem:[#allocation7 + $0x1e8] sm:$0xf]
    %v1752 = vld [vmem:[#allocation7 + $0x1ec] sm:$0xf]
    %v1753 = vld [vmem:[#allocation7 + $0x1f0] sm:$0xf]
    %v1754 = vld [vmem:[#allocation7 + $0x1f4] sm:$0xf]
    %v1755 = vld [vmem:[#allocation7 + $0x1f8] sm:$0xf]
    %v1756 = vld [vmem:[#allocation7 + $0x1fc] sm:$0xf]
    %v1757 = vld [vmem:[#allocation7 + $0x200] sm:$0xf]
    %v1758 = vld [vmem:[#allocation7 + $0x204] sm:$0xf]
    %v1759 = vld [vmem:[#allocation7 + $0x208] sm:$0xf]
    %v1760 = vld [vmem:[#allocation7 + $0x20c] sm:$0xf]
    %v1761 = vld [vmem:[#allocation7 + $0x210] sm:$0xf]
    %v1762 = vld [vmem:[#allocation7 + $0x214] sm:$0xf]
    %v1763 = vld [vmem:[#allocation7 + $0x218] sm:$0xf]
    %v1764 = vld [vmem:[#allocation7 + $0x21c] sm:$0xf]
    %v1765 = vld [vmem:[#allocation7 + $0x220] sm:$0xf]
    %v1766 = vld [vmem:[#allocation7 + $0x224] sm:$0xf]
    %v1767 = vld [vmem:[#allocation7 + $0x228] sm:$0xf]
    %v1768 = vld [vmem:[#allocation7 + $0x22c] sm:$0xf]
    %v1769 = vld [vmem:[#allocation7 + $0x230] sm:$0xf]
    %v1770 = vld [vmem:[#allocation7 + $0x234] sm:$0xf]
    %v1771 = vld [vmem:[#allocation7 + $0x238] sm:$0xf]
    %v1772 = vld [vmem:[#allocation7 + $0x23c] sm:$0xf]
    %v1773 = vld [vmem:[#allocation7 + $0x240] sm:$0xf]
    %v1774 = vld [vmem:[#allocation7 + $0x244] sm:$0xf]
    %v1775 = vld [vmem:[#allocation7 + $0x248] sm:$0xf]
    %v1776 = vld [vmem:[#allocation7 + $0x24c] sm:$0xf]
    %v1777 = vld [vmem:[#allocation7 + $0x250] sm:$0xf]
    %v1778 = vld [vmem:[#allocation7 + $0x254] sm:$0xf]
    %v1779 = vld [vmem:[#allocation7 + $0x258] sm:$0xf]
    %v1780 = vld [vmem:[#allocation7 + $0x25c] sm:$0xf]
    %v1781 = vld [vmem:[#allocation7 + $0x260] sm:$0xf]
    %v1782 = vld [vmem:[#allocation7 + $0x264] sm:$0xf]
    %v1783 = vld [vmem:[#allocation7 + $0x268] sm:$0xf]
    %v1784 = vld [vmem:[#allocation7 + $0x26c] sm:$0xf]
    %v1785 = vld [vmem:[#allocation7 + $0x270] sm:$0xf]
    %v1786 = vld [vmem:[#allocation7 + $0x274] sm:$0xf]
    %v1787 = vld [vmem:[#allocation7 + $0x278] sm:$0xf]
    %v1788 = vld [vmem:[#allocation7 + $0x27c] sm:$0xf]
    %v1789 = vld [vmem:[#allocation7 + $0x280] sm:$0xf]
    %v1790 = vld [vmem:[#allocation7 + $0x284] sm:$0xf]
    %v1791 = vld [vmem:[#allocation7 + $0x288] sm:$0xf]
    %v1792 = vld [vmem:[#allocation7 + $0x28c] sm:$0xf]
    %v1793 = vld [vmem:[#allocation7 + $0x290] sm:$0xf]
    %v1794 = vld [vmem:[#allocation7 + $0x294] sm:$0xf]
    %v1795 = vld [vmem:[#allocation7 + $0x298] sm:$0xf]
    %v1796 = vld [vmem:[#allocation7 + $0x29c] sm:$0xf]
    %v1797 = vld [vmem:[#allocation7 + $0x2a0] sm:$0xf]
    %v1798 = vld [vmem:[#allocation7 + $0x2a4] sm:$0xf]
    %v1799 = vld [vmem:[#allocation7 + $0x2a8] sm:$0xf]
    %v1800 = vld [vmem:[#allocation7 + $0x2ac] sm:$0xf]
    %v1801 = vld [vmem:[#allocation7 + $0x2b0] sm:$0xf]
    %v1802 = vld [vmem:[#allocation7 + $0x2b4] sm:$0xf]
    %v1803 = vld [vmem:[#allocation7 + $0x2b8] sm:$0xf]
    %v1804 = vld [vmem:[#allocation7 + $0x2bc] sm:$0xf]
    %v1805 = vld [vmem:[#allocation7 + $0x2c0] sm:$0xf]
    %v1806 = vld [vmem:[#allocation7 + $0x2c4] sm:$0xf]
    %v1807 = vld [vmem:[#allocation7 + $0x2c8] sm:$0xf]
    %v1808 = vld [vmem:[#allocation7 + $0x2cc] sm:$0xf]
    %v1809 = vld [vmem:[#allocation7 + $0x2d0] sm:$0xf]
    %v1810 = vld [vmem:[#allocation7 + $0x2d4] sm:$0xf]
    %v1811 = vld [vmem:[#allocation7 + $0x2d8] sm:$0xf]
    %v1812 = vld [vmem:[#allocation7 + $0x2dc] sm:$0xf]
    %v1813 = vld [vmem:[#allocation7 + $0x2e0] sm:$0xf]
    %v1814 = vld [vmem:[#allocation7 + $0x2e4] sm:$0xf]
    %v1815 = vld [vmem:[#allocation7 + $0x2e8] sm:$0xf]
    %v1816 = vld [vmem:[#allocation7 + $0x2ec] sm:$0xf]
    %v1817 = vld [vmem:[#allocation7 + $0x2f0] sm:$0xf]
    %v1818 = vld [vmem:[#allocation7 + $0x2f4] sm:$0xf]
    %v1819 = vld [vmem:[#allocation7 + $0x2f8] sm:$0xf]
    %v1820 = vld [vmem:[#allocation7 + $0x2fc] sm:$0xf]
    %v1821 = vlaneseq
    %v1822 = vshrl.u32 %v1821, 7
    %v1823 = vsub.s32 0, %v1822
    %v1824 = vrot.slane %v123, %v1823
    %v2017 = vunpack.c.l.b16 %v1629
    %v2018 = vunpack.c.l.b16 %v1630
    %v2019 = vunpack.c.l.b16 %v1631
    %v2020 = vunpack.c.l.b16 %v1632
    %v2021 = vunpack.c.l.b16 %v1633
    %v2022 = vunpack.c.l.b16 %v1634
    %v2023 = vunpack.c.l.b16 %v1635
    %v2024 = vunpack.c.l.b16 %v1636
    %v2025 = vunpack.c.l.b16 %v1637
    %v2026 = vunpack.c.l.b16 %v1638
    %v2027 = vunpack.c.l.b16 %v1639
    %v2028 = vunpack.c.l.b16 %v1640
    %v2029 = vunpack.c.l.b16 %v1641
    %v2030 = vunpack.c.l.b16 %v1642
    %v2031 = vunpack.c.l.b16 %v1643
    %v2032 = vunpack.c.l.b16 %v1644
    %v2033 = vunpack.c.l.b16 %v1645
    %v2034 = vunpack.c.l.b16 %v1646
    %v2035 = vunpack.c.l.b16 %v1647
    %v2036 = vunpack.c.l.b16 %v1648
    %v2037 = vunpack.c.l.b16 %v1649
    %v2038 = vunpack.c.l.b16 %v1650
    %v2039 = vunpack.c.l.b16 %v1651
    %v2040 = vunpack.c.l.b16 %v1652
    %v2041 = vunpack.c.l.b16 %v1653
    %v2042 = vunpack.c.l.b16 %v1654
    %v2043 = vunpack.c.l.b16 %v1655
    %v2044 = vunpack.c.l.b16 %v1656
    %v2045 = vunpack.c.l.b16 %v1657
    %v2046 = vunpack.c.l.b16 %v1658
    %v2047 = vunpack.c.l.b16 %v1659
    %v2048 = vunpack.c.l.b16 %v1660
    %v2049 = vunpack.c.l.b16 %v1661
    %v2050 = vunpack.c.l.b16 %v1662
    %v2051 = vunpack.c.l.b16 %v1663
    %v2052 = vunpack.c.l.b16 %v1664
    %v2053 = vunpack.c.l.b16 %v1665
    %v2054 = vunpack.c.l.b16 %v1666
    %v2055 = vunpack.c.l.b16 %v1667
    %v2056 = vunpack.c.l.b16 %v1668
    %v2057 = vunpack.c.l.b16 %v1669
    %v2058 = vunpack.c.l.b16 %v1670
    %v2059 = vunpack.c.l.b16 %v1671
    %v2060 = vunpack.c.l.b16 %v1672
    %v2061 = vunpack.c.l.b16 %v1673
    %v2062 = vunpack.c.l.b16 %v1674
    %v2063 = vunpack.c.l.b16 %v1675
    %v2064 = vunpack.c.l.b16 %v1676
    %v2065 = vunpack.c.l.b16 %v1677
    %v2066 = vunpack.c.l.b16 %v1678
    %v2067 = vunpack.c.l.b16 %v1679
    %v2068 = vunpack.c.l.b16 %v1680
    %v2069 = vunpack.c.l.b16 %v1681
    %v2070 = vunpack.c.l.b16 %v1682
    %v2071 = vunpack.c.l.b16 %v1683
    %v2072 = vunpack.c.l.b16 %v1684
    %v2073 = vunpack.c.l.b16 %v1685
    %v2074 = vunpack.c.l.b16 %v1686
    %v2075 = vunpack.c.l.b16 %v1687
    %v2076 = vunpack.c.l.b16 %v1688
    %v2077 = vunpack.c.l.b16 %v1689
    %v2078 = vunpack.c.l.b16 %v1690
    %v2079 = vunpack.c.l.b16 %v1691
    %v2080 = vunpack.c.l.b16 %v1692
    %v2081 = vunpack.c.l.b16 %v1693
    %v2082 = vunpack.c.l.b16 %v1694
    %v2083 = vunpack.c.l.b16 %v1695
    %v2084 = vunpack.c.l.b16 %v1696
    %v2085 = vunpack.c.l.b16 %v1697
    %v2086 = vunpack.c.l.b16 %v1698
    %v2087 = vunpack.c.l.b16 %v1699
    %v2088 = vunpack.c.l.b16 %v1700
    %v2089 = vunpack.c.l.b16 %v1701
    %v2090 = vunpack.c.l.b16 %v1702
    %v2091 = vunpack.c.l.b16 %v1703
    %v2092 = vunpack.c.l.b16 %v1704
    %v2093 = vunpack.c.l.b16 %v1705
    %v2094 = vunpack.c.l.b16 %v1706
    %v2095 = vunpack.c.l.b16 %v1707
    %v2096 = vunpack.c.l.b16 %v1708
    %v2097 = vunpack.c.l.b16 %v1709
    %v2098 = vunpack.c.l.b16 %v1710
    %v2099 = vunpack.c.l.b16 %v1711
    %v2100 = vunpack.c.l.b16 %v1712
    %v2101 = vunpack.c.l.b16 %v1713
    %v2102 = vunpack.c.l.b16 %v1714
    %v2103 = vunpack.c.l.b16 %v1715
    %v2104 = vunpack.c.l.b16 %v1716
    %v2105 = vunpack.c.l.b16 %v1717
    %v2106 = vunpack.c.l.b16 %v1718
    %v2107 = vunpack.c.l.b16 %v1719
    %v2108 = vunpack.c.l.b16 %v1720
    %v2109 = vunpack.c.l.b16 %v1721
    %v2110 = vunpack.c.l.b16 %v1722
    %v2111 = vunpack.c.l.b16 %v1723
    %v2112 = vunpack.c.l.b16 %v1724
    %v2113 = vunpack.c.l.b16 %v1725
    %v2114 = vunpack.c.l.b16 %v1726
    %v2115 = vunpack.c.l.b16 %v1727
    %v2116 = vunpack.c.l.b16 %v1728
    %v2117 = vunpack.c.l.b16 %v1729
    %v2118 = vunpack.c.l.b16 %v1730
    %v2119 = vunpack.c.l.b16 %v1731
    %v2120 = vunpack.c.l.b16 %v1732
    %v2121 = vunpack.c.l.b16 %v1733
    %v2122 = vunpack.c.l.b16 %v1734
    %v2123 = vunpack.c.l.b16 %v1735
    %v2124 = vunpack.c.l.b16 %v1736
    %v2125 = vunpack.c.l.b16 %v1737
    %v2126 = vunpack.c.l.b16 %v1738
    %v2127 = vunpack.c.l.b16 %v1739
    %v2128 = vunpack.c.l.b16 %v1740
    %v2129 = vunpack.c.l.b16 %v1741
    %v2130 = vunpack.c.l.b16 %v1742
    %v2131 = vunpack.c.l.b16 %v1743
    %v2132 = vunpack.c.l.b16 %v1744
    %v2133 = vunpack.c.l.b16 %v1745
    %v2134 = vunpack.c.l.b16 %v1746
    %v2135 = vunpack.c.l.b16 %v1747
    %v2136 = vunpack.c.l.b16 %v1748
    %v2137 = vunpack.c.l.b16 %v1749
    %v2138 = vunpack.c.l.b16 %v1750
    %v2139 = vunpack.c.l.b16 %v1751
    %v2140 = vunpack.c.l.b16 %v1752
    %v2141 = vunpack.c.l.b16 %v1753
    %v2142 = vunpack.c.l.b16 %v1754
    %v2143 = vunpack.c.l.b16 %v1755
    %v2144 = vunpack.c.l.b16 %v1756
    %v2145 = vunpack.c.l.b16 %v1757
    %v2146 = vunpack.c.l.b16 %v1758
    %v2147 = vunpack.c.l.b16 %v1759
    %v2148 = vunpack.c.l.b16 %v1760
    %v2149 = vunpack.c.l.b16 %v1761
    %v2150 = vunpack.c.l.b16 %v1762
    %v2151 = vunpack.c.l.b16 %v1763
    %v2152 = vunpack.c.l.b16 %v1764
    %v2153 = vunpack.c.l.b16 %v1765
    %v2154 = vunpack.c.l.b16 %v1766
    %v2155 = vunpack.c.l.b16 %v1767
    %v2156 = vunpack.c.l.b16 %v1768
    %v2157 = vunpack.c.l.b16 %v1769
    %v2158 = vunpack.c.l.b16 %v1770
    %v2159 = vunpack.c.l.b16 %v1771
    %v2160 = vunpack.c.l.b16 %v1772
    %v2161 = vunpack.c.l.b16 %v1773
    %v2162 = vunpack.c.l.b16 %v1774
    %v2163 = vunpack.c.l.b16 %v1775
    %v2164 = vunpack.c.l.b16 %v1776
    %v2165 = vunpack.c.l.b16 %v1777
    %v2166 = vunpack.c.l.b16 %v1778
    %v2167 = vunpack.c.l.b16 %v1779
    %v2168 = vunpack.c.l.b16 %v1780
    %v2169 = vunpack.c.l.b16 %v1781
    %v2170 = vunpack.c.l.b16 %v1782
    %v2171 = vunpack.c.l.b16 %v1783
    %v2172 = vunpack.c.l.b16 %v1784
    %v2173 = vunpack.c.l.b16 %v1785
    %v2174 = vunpack.c.l.b16 %v1786
    %v2175 = vunpack.c.l.b16 %v1787
    %v2176 = vunpack.c.l.b16 %v1788
    %v2177 = vunpack.c.l.b16 %v1789
    %v2178 = vunpack.c.l.b16 %v1790
    %v2179 = vunpack.c.l.b16 %v1791
    %v2180 = vunpack.c.l.b16 %v1792
    %v2181 = vunpack.c.l.b16 %v1793
    %v2182 = vunpack.c.l.b16 %v1794
    %v2183 = vunpack.c.l.b16 %v1795
    %v2184 = vunpack.c.l.b16 %v1796
    %v2185 = vunpack.c.l.b16 %v1797
    %v2186 = vunpack.c.l.b16 %v1798
    %v2187 = vunpack.c.l.b16 %v1799
    %v2188 = vunpack.c.l.b16 %v1800
    %v2189 = vunpack.c.l.b16 %v1801
    %v2190 = vunpack.c.l.b16 %v1802
    %v2191 = vunpack.c.l.b16 %v1803
    %v2192 = vunpack.c.l.b16 %v1804
    %v2193 = vunpack.c.l.b16 %v1805
    %v2194 = vunpack.c.l.b16 %v1806
    %v2195 = vunpack.c.l.b16 %v1807
    %v2196 = vunpack.c.l.b16 %v1808
    %v2197 = vunpack.c.l.b16 %v1809
    %v2198 = vunpack.c.l.b16 %v1810
    %v2199 = vunpack.c.l.b16 %v1811
    %v2200 = vunpack.c.l.b16 %v1812
    %v2201 = vunpack.c.l.b16 %v1813
    %v2202 = vunpack.c.l.b16 %v1814
    %v2203 = vunpack.c.l.b16 %v1815
    %v2204 = vunpack.c.l.b16 %v1816
    %v2205 = vunpack.c.l.b16 %v1817
    %v2206 = vunpack.c.l.b16 %v1818
    %v2207 = vunpack.c.l.b16 %v1819
    %v2208 = vunpack.c.l.b16 %v1820
    %v2209 = vpack.c.b16 %v2018, %v2017
    %v2210 = vpack.c.b16 %v2020, %v2019
    %v2211 = vpack.c.b16 %v2022, %v2021
    %v2212 = vpack.c.b16 %v2024, %v2023
    %v2213 = vpack.c.b16 %v2026, %v2025
    %v2214 = vpack.c.b16 %v2028, %v2027
    %v2215 = vpack.c.b16 %v2030, %v2029
    %v2216 = vpack.c.b16 %v2032, %v2031
    %v2217 = vpack.c.b16 %v2034, %v2033
    %v2218 = vpack.c.b16 %v2036, %v2035
    %v2219 = vpack.c.b16 %v2038, %v2037
    %v2220 = vpack.c.b16 %v2040, %v2039
    %v2221 = vpack.c.b16 %v2042, %v2041
    %v2222 = vpack.c.b16 %v2044, %v2043
    %v2223 = vpack.c.b16 %v2046, %v2045
    %v2224 = vpack.c.b16 %v2048, %v2047
    %v2225 = vpack.c.b16 %v2050, %v2049
    %v2226 = vpack.c.b16 %v2052, %v2051
    %v2227 = vpack.c.b16 %v2054, %v2053
    %v2228 = vpack.c.b16 %v2056, %v2055
    %v2229 = vpack.c.b16 %v2058, %v2057
    %v2230 = vpack.c.b16 %v2060, %v2059
    %v2231 = vpack.c.b16 %v2062, %v2061
    %v2232 = vpack.c.b16 %v2064, %v2063
    %v2233 = vpack.c.b16 %v2066, %v2065
    %v2234 = vpack.c.b16 %v2068, %v2067
    %v2235 = vpack.c.b16 %v2070, %v2069
    %v2236 = vpack.c.b16 %v2072, %v2071
    %v2237 = vpack.c.b16 %v2074, %v2073
    %v2238 = vpack.c.b16 %v2076, %v2075
    %v2239 = vpack.c.b16 %v2078, %v2077
    %v2240 = vpack.c.b16 %v2080, %v2079
    %v2241 = vpack.c.b16 %v2082, %v2081
    %v2242 = vpack.c.b16 %v2084, %v2083
    %v2243 = vpack.c.b16 %v2086, %v2085
    %v2244 = vpack.c.b16 %v2088, %v2087
    %v2245 = vpack.c.b16 %v2090, %v2089
    %v2246 = vpack.c.b16 %v2092, %v2091
    %v2247 = vpack.c.b16 %v2094, %v2093
    %v2248 = vpack.c.b16 %v2096, %v2095
    %v2249 = vpack.c.b16 %v2098, %v2097
    %v2250 = vpack.c.b16 %v2100, %v2099
    %v2251 = vpack.c.b16 %v2102, %v2101
    %v2252 = vpack.c.b16 %v2104, %v2103
    %v2253 = vpack.c.b16 %v2106, %v2105
    %v2254 = vpack.c.b16 %v2108, %v2107
    %v2255 = vpack.c.b16 %v2110, %v2109
    %v2256 = vpack.c.b16 %v2112, %v2111
    %v2257 = vpack.c.b16 %v2114, %v2113
    %v2258 = vpack.c.b16 %v2116, %v2115
    %v2259 = vpack.c.b16 %v2118, %v2117
    %v2260 = vpack.c.b16 %v2120, %v2119
    %v2261 = vpack.c.b16 %v2122, %v2121
    %v2262 = vpack.c.b16 %v2124, %v2123
    %v2263 = vpack.c.b16 %v2126, %v2125
    %v2264 = vpack.c.b16 %v2128, %v2127
    %v2265 = vpack.c.b16 %v2130, %v2129
    %v2266 = vpack.c.b16 %v2132, %v2131
    %v2267 = vpack.c.b16 %v2134, %v2133
    %v2268 = vpack.c.b16 %v2136, %v2135
    %v2269 = vpack.c.b16 %v2138, %v2137
    %v2270 = vpack.c.b16 %v2140, %v2139
    %v2271 = vpack.c.b16 %v2142, %v2141
    %v2272 = vpack.c.b16 %v2144, %v2143
    %v2273 = vpack.c.b16 %v2146, %v2145
    %v2274 = vpack.c.b16 %v2148, %v2147
    %v2275 = vpack.c.b16 %v2150, %v2149
    %v2276 = vpack.c.b16 %v2152, %v2151
    %v2277 = vpack.c.b16 %v2154, %v2153
    %v2278 = vpack.c.b16 %v2156, %v2155
    %v2279 = vpack.c.b16 %v2158, %v2157
    %v2280 = vpack.c.b16 %v2160, %v2159
    %v2281 = vpack.c.b16 %v2162, %v2161
    %v2282 = vpack.c.b16 %v2164, %v2163
    %v2283 = vpack.c.b16 %v2166, %v2165
    %v2284 = vpack.c.b16 %v2168, %v2167
    %v2285 = vpack.c.b16 %v2170, %v2169
    %v2286 = vpack.c.b16 %v2172, %v2171
    %v2287 = vpack.c.b16 %v2174, %v2173
    %v2288 = vpack.c.b16 %v2176, %v2175
    %v2289 = vpack.c.b16 %v2178, %v2177
    %v2290 = vpack.c.b16 %v2180, %v2179
    %v2291 = vpack.c.b16 %v2182, %v2181
    %v2292 = vpack.c.b16 %v2184, %v2183
    %v2293 = vpack.c.b16 %v2186, %v2185
    %v2294 = vpack.c.b16 %v2188, %v2187
    %v2295 = vpack.c.b16 %v2190, %v2189
    %v2296 = vpack.c.b16 %v2192, %v2191
    %v2297 = vpack.c.b16 %v2194, %v2193
    %v2298 = vpack.c.b16 %v2196, %v2195
    %v2299 = vpack.c.b16 %v2198, %v2197
    %v2300 = vpack.c.b16 %v2200, %v2199
    %v2301 = vpack.c.b16 %v2202, %v2201
    %v2302 = vpack.c.b16 %v2204, %v2203
    %v2303 = vpack.c.b16 %v2206, %v2205
    %v2304 = vpack.c.b16 %v2208, %v2207
    %2401 = vmatprep.subr.bf16.mxu0 0
    %2402 = vmatpush1.bf16.msra.mxu0 %v2209
    %2403 = vmatprep.subr.bf16.mxu0 0
    %2404 = vmatpush1.bf16.msra.mxu0 %v2210
    %2405 = vmatprep.subr.bf16.mxu0 0
    %2406 = vmatpush1.bf16.msra.mxu0 %v2211
    %2407 = vmatprep.subr.bf16.mxu0 0
    %2408 = vmatpush1.bf16.msra.mxu0 %v2212
    %2409 = vmatprep.subr.bf16.mxu0 0
    %2410 = vmatpush1.bf16.msra.mxu0 %v2213
    %2411 = vmatprep.subr.bf16.mxu0 0
    %2412 = vmatpush1.bf16.msra.mxu0 %v2214
    %2413 = vmatprep.subr.bf16.mxu0 0
    %2414 = vmatpush1.bf16.msra.mxu0 %v2215
    %2415 = vmatprep.subr.bf16.mxu0 0
    %2416 = vmatpush1.bf16.msra.mxu0 %v2216
    %2417 = vmatprep.subr.bf16.mxu0 0
    %2418 = vmatpush1.bf16.msra.mxu0 %v2217
    %2419 = vmatprep.subr.bf16.mxu0 0
    %2420 = vmatpush1.bf16.msra.mxu0 %v2218
    %2421 = vmatprep.subr.bf16.mxu0 0
    %2422 = vmatpush1.bf16.msra.mxu0 %v2219
    %2423 = vmatprep.subr.bf16.mxu0 0
    %2424 = vmatpush1.bf16.msra.mxu0 %v2220
    %2425 = vmatprep.subr.bf16.mxu0 0
    %2426 = vmatpush1.bf16.msra.mxu0 %v2221
    %2427 = vmatprep.subr.bf16.mxu0 0
    %2428 = vmatpush1.bf16.msra.mxu0 %v2222
    %2429 = vmatprep.subr.bf16.mxu0 0
    %2430 = vmatpush1.bf16.msra.mxu0 %v2223
    %2431 = vmatprep.subr.bf16.mxu0 0
    %2432 = vmatpush1.bf16.msra.mxu0 %v2224
    %2433 = vmatprep.mubr.bf16.mxu0 %v1618
    %2434 = vmatmul.mubr.bf16.gmra.mrb[0].mxu0 %v1617
    %v2435 = vpop.f32.mrb[0].mxu0
    %v2436 = vadd.f32 %v1824, %v2435
    %v2437 = vpop.f32.mrb[0].mxu0
    %v2438 = vpop.f32.mrb[0].mxu0
    %v2439 = vpop.f32.mrb[0].mxu0
    %2440 = vdwg.mxu0
    %2441 = vmatprep.subr.bf16.mxu0 0
    %2442 = vmatpush1.bf16.msra.mxu0 %v2225
    %2443 = vmatprep.subr.bf16.mxu0 0
    %2444 = vmatpush1.bf16.msra.mxu0 %v2226
    %2445 = vmatprep.subr.bf16.mxu0 0
    %2446 = vmatpush1.bf16.msra.mxu0 %v2227
    %2447 = vmatprep.subr.bf16.mxu0 0
    %2448 = vmatpush1.bf16.msra.mxu0 %v2228
    %2449 = vmatprep.subr.bf16.mxu0 0
    %2450 = vmatpush1.bf16.msra.mxu0 %v2229
    %2451 = vmatprep.subr.bf16.mxu0 0
    %2452 = vmatpush1.bf16.msra.mxu0 %v2230
    %2453 = vmatprep.subr.bf16.mxu0 0
    %2454 = vmatpush1.bf16.msra.mxu0 %v2231
    %2455 = vmatprep.subr.bf16.mxu0 0
    %2456 = vmatpush1.bf16.msra.mxu0 %v2232
    %2457 = vmatprep.subr.bf16.mxu0 0
    %2458 = vmatpush1.bf16.msra.mxu0 %v2233
    %2459 = vmatprep.subr.bf16.mxu0 0
    %2460 = vmatpush1.bf16.msra.mxu0 %v2234
    %2461 = vmatprep.subr.bf16.mxu0 0
    %2462 = vmatpush1.bf16.msra.mxu0 %v2235
    %2463 = vmatprep.subr.bf16.mxu0 0
    %2464 = vmatpush1.bf16.msra.mxu0 %v2236
    %2465 = vmatprep.subr.bf16.mxu0 0
    %2466 = vmatpush1.bf16.msra.mxu0 %v2237
    %2467 = vmatprep.subr.bf16.mxu0 0
    %2468 = vmatpush1.bf16.msra.mxu0 %v2238
    %2469 = vmatprep.subr.bf16.mxu0 0
    %2470 = vmatpush1.bf16.msra.mxu0 %v2239
    %2471 = vmatprep.subr.bf16.mxu0 0
    %2472 = vmatpush1.bf16.msra.mxu0 %v2240
    %2473 = vmatprep.mubr.bf16.mxu0 %v1620
    %2474 = vmatmul.mubr.bf16.gmra.mrb[0].mxu0 %v1619
    %v2475 = vpop.f32.mrb[0].mxu0
    %v2476 = vadd.f32 %v2436, %v2475
    %v2477 = vpop.f32.mrb[0].mxu0
    %v2478 = vpop.f32.mrb[0].mxu0
    %v2479 = vpop.f32.mrb[0].mxu0
    %2480 = vdwg.mxu0
    %2481 = vmatprep.subr.bf16.mxu0 0
    %2482 = vmatpush1.bf16.msra.mxu0 %v2241
    %2483 = vmatprep.subr.bf16.mxu0 0
    %2484 = vmatpush1.bf16.msra.mxu0 %v2242
    %2485 = vmatprep.subr.bf16.mxu0 0
    %2486 = vmatpush1.bf16.msra.mxu0 %v2243
    %2487 = vmatprep.subr.bf16.mxu0 0
    %2488 = vmatpush1.bf16.msra.mxu0 %v2244
    %2489 = vmatprep.subr.bf16.mxu0 0
    %2490 = vmatpush1.bf16.msra.mxu0 %v2245
    %2491 = vmatprep.subr.bf16.mxu0 0
    %2492 = vmatpush1.bf16.msra.mxu0 %v2246
    %2493 = vmatprep.subr.bf16.mxu0 0
    %2494 = vmatpush1.bf16.msra.mxu0 %v2247
    %2495 = vmatprep.subr.bf16.mxu0 0
    %2496 = vmatpush1.bf16.msra.mxu0 %v2248
    %2497 = vmatprep.subr.bf16.mxu0 0
    %2498 = vmatpush1.bf16.msra.mxu0 %v2249
    %2499 = vmatprep.subr.bf16.mxu0 0
    %2500 = vmatpush1.bf16.msra.mxu0 %v2250
    %2501 = vmatprep.subr.bf16.mxu0 0
    %2502 = vmatpush1.bf16.msra.mxu0 %v2251
    %2503 = vmatprep.subr.bf16.mxu0 0
    %2504 = vmatpush1.bf16.msra.mxu0 %v2252
    %2505 = vmatprep.subr.bf16.mxu0 0
    %2506 = vmatpush1.bf16.msra.mxu0 %v2253
    %2507 = vmatprep.subr.bf16.mxu0 0
    %2508 = vmatpush1.bf16.msra.mxu0 %v2254
    %2509 = vmatprep.subr.bf16.mxu0 0
    %2510 = vmatpush1.bf16.msra.mxu0 %v2255
    %2511 = vmatprep.subr.bf16.mxu0 0
    %2512 = vmatpush1.bf16.msra.mxu0 %v2256
    %2513 = vmatprep.mubr.bf16.mxu0 %v1622
    %2514 = vmatmul.mubr.bf16.gmra.mrb[0].mxu0 %v1621
    %v2515 = vpop.f32.mrb[0].mxu0
    %v2516 = vadd.f32 %v2476, %v2515
    %v2517 = vpop.f32.mrb[0].mxu0
    %v2518 = vpop.f32.mrb[0].mxu0
    %v2519 = vpop.f32.mrb[0].mxu0
    %2520 = vdwg.mxu0
    %2521 = vmatprep.subr.bf16.mxu0 0
    %2522 = vmatpush1.bf16.msra.mxu0 %v2257
    %2523 = vmatprep.subr.bf16.mxu0 0
    %2524 = vmatpush1.bf16.msra.mxu0 %v2258
    %2525 = vmatprep.subr.bf16.mxu0 0
    %2526 = vmatpush1.bf16.msra.mxu0 %v2259
    %2527 = vmatprep.subr.bf16.mxu0 0
    %2528 = vmatpush1.bf16.msra.mxu0 %v2260
    %2529 = vmatprep.subr.bf16.mxu0 0
    %2530 = vmatpush1.bf16.msra.mxu0 %v2261
    %2531 = vmatprep.subr.bf16.mxu0 0
    %2532 = vmatpush1.bf16.msra.mxu0 %v2262
    %2533 = vmatprep.subr.bf16.mxu0 0
    %2534 = vmatpush1.bf16.msra.mxu0 %v2263
    %2535 = vmatprep.subr.bf16.mxu0 0
    %2536 = vmatpush1.bf16.msra.mxu0 %v2264
    %2537 = vmatprep.subr.bf16.mxu0 0
    %2538 = vmatpush1.bf16.msra.mxu0 %v2265
    %2539 = vmatprep.subr.bf16.mxu0 0
    %2540 = vmatpush1.bf16.msra.mxu0 %v2266
    %2541 = vmatprep.subr.bf16.mxu0 0
    %2542 = vmatpush1.bf16.msra.mxu0 %v2267
    %2543 = vmatprep.subr.bf16.mxu0 0
    %2544 = vmatpush1.bf16.msra.mxu0 %v2268
    %2545 = vmatprep.subr.bf16.mxu0 0
    %2546 = vmatpush1.bf16.msra.mxu0 %v2269
    %2547 = vmatprep.subr.bf16.mxu0 0
    %2548 = vmatpush1.bf16.msra.mxu0 %v2270
    %2549 = vmatprep.subr.bf16.mxu0 0
    %2550 = vmatpush1.bf16.msra.mxu0 %v2271
    %2551 = vmatprep.subr.bf16.mxu0 0
    %2552 = vmatpush1.bf16.msra.mxu0 %v2272
    %2553 = vmatprep.mubr.bf16.mxu0 %v1624
    %2554 = vmatmul.mubr.bf16.gmra.mrb[0].mxu0 %v1623
    %v2555 = vpop.f32.mrb[0].mxu0
    %v2556 = vadd.f32 %v2516, %v2555
    %v2557 = vpop.f32.mrb[0].mxu0
    %v2558 = vpop.f32.mrb[0].mxu0
    %v2559 = vpop.f32.mrb[0].mxu0
    %2560 = vdwg.mxu0
    %2561 = vmatprep.subr.bf16.mxu0 0
    %2562 = vmatpush1.bf16.msra.mxu0 %v2273
    %2563 = vmatprep.subr.bf16.mxu0 0
    %2564 = vmatpush1.bf16.msra.mxu0 %v2274
    %2565 = vmatprep.subr.bf16.mxu0 0
    %2566 = vmatpush1.bf16.msra.mxu0 %v2275
    %2567 = vmatprep.subr.bf16.mxu0 0
    %2568 = vmatpush1.bf16.msra.mxu0 %v2276
    %2569 = vmatprep.subr.bf16.mxu0 0
    %2570 = vmatpush1.bf16.msra.mxu0 %v2277
    %2571 = vmatprep.subr.bf16.mxu0 0
    %2572 = vmatpush1.bf16.msra.mxu0 %v2278
    %2573 = vmatprep.subr.bf16.mxu0 0
    %2574 = vmatpush1.bf16.msra.mxu0 %v2279
    %2575 = vmatprep.subr.bf16.mxu0 0
    %2576 = vmatpush1.bf16.msra.mxu0 %v2280
    %2577 = vmatprep.subr.bf16.mxu0 0
    %2578 = vmatpush1.bf16.msra.mxu0 %v2281
    %2579 = vmatprep.subr.bf16.mxu0 0
    %2580 = vmatpush1.bf16.msra.mxu0 %v2282
    %2581 = vmatprep.subr.bf16.mxu0 0
    %2582 = vmatpush1.bf16.msra.mxu0 %v2283
    %2583 = vmatprep.subr.bf16.mxu0 0
    %2584 = vmatpush1.bf16.msra.mxu0 %v2284
    %2585 = vmatprep.subr.bf16.mxu0 0
    %2586 = vmatpush1.bf16.msra.mxu0 %v2285
    %2587 = vmatprep.subr.bf16.mxu0 0
    %2588 = vmatpush1.bf16.msra.mxu0 %v2286
    %2589 = vmatprep.subr.bf16.mxu0 0
    %2590 = vmatpush1.bf16.msra.mxu0 %v2287
    %2591 = vmatprep.subr.bf16.mxu0 0
    %2592 = vmatpush1.bf16.msra.mxu0 %v2288
    %2593 = vmatprep.mubr.bf16.mxu0 %v1626
    %2594 = vmatmul.mubr.bf16.gmra.mrb[0].mxu0 %v1625
    %v2595 = vpop.f32.mrb[0].mxu0
    %v2596 = vadd.f32 %v2556, %v2595
    %v2597 = vpop.f32.mrb[0].mxu0
    %v2598 = vpop.f32.mrb[0].mxu0
    %v2599 = vpop.f32.mrb[0].mxu0
    %2600 = vdwg.mxu0
    %2601 = vmatprep.subr.bf16.mxu0 0
    %2602 = vmatpush1.bf16.msra.mxu0 %v2289
    %2603 = vmatprep.subr.bf16.mxu0 0
    %2604 = vmatpush1.bf16.msra.mxu0 %v2290
    %2605 = vmatprep.subr.bf16.mxu0 0
    %2606 = vmatpush1.bf16.msra.mxu0 %v2291
    %2607 = vmatprep.subr.bf16.mxu0 0
    %2608 = vmatpush1.bf16.msra.mxu0 %v2292
    %2609 = vmatprep.subr.bf16.mxu0 0
    %2610 = vmatpush1.bf16.msra.mxu0 %v2293
    %2611 = vmatprep.subr.bf16.mxu0 0
    %2612 = vmatpush1.bf16.msra.mxu0 %v2294
    %2613 = vmatprep.subr.bf16.mxu0 0
    %2614 = vmatpush1.bf16.msra.mxu0 %v2295
    %2615 = vmatprep.subr.bf16.mxu0 0
    %2616 = vmatpush1.bf16.msra.mxu0 %v2296
    %2617 = vmatprep.subr.bf16.mxu0 0
    %2618 = vmatpush1.bf16.msra.mxu0 %v2297
    %2619 = vmatprep.subr.bf16.mxu0 0
    %2620 = vmatpush1.bf16.msra.mxu0 %v2298
    %2621 = vmatprep.subr.bf16.mxu0 0
    %2622 = vmatpush1.bf16.msra.mxu0 %v2299
    %2623 = vmatprep.subr.bf16.mxu0 0
    %2624 = vmatpush1.bf16.msra.mxu0 %v2300
    %2625 = vmatprep.subr.bf16.mxu0 0
    %2626 = vmatpush1.bf16.msra.mxu0 %v2301
    %2627 = vmatprep.subr.bf16.mxu0 0
    %2628 = vmatpush1.bf16.msra.mxu0 %v2302
    %2629 = vmatprep.subr.bf16.mxu0 0
    %2630 = vmatpush1.bf16.msra.mxu0 %v2303
    %2631 = vmatprep.subr.bf16.mxu0 0
    %2632 = vmatpush1.bf16.msra.mxu0 %v2304
    %2633 = vmatprep.mubr.bf16.mxu0 %v1628
    %2634 = vmatmul.mubr.bf16.gmra.mrb[0].mxu0 %v1627
    %v2635 = vpop.f32.mrb[0].mxu0
    %v2636 = vadd.f32 %v2596, %v2635
    %v2637 = vpop.f32.mrb[0].mxu0
    %v2638 = vpop.f32.mrb[0].mxu0
    %v2639 = vpop.f32.mrb[0].mxu0
    %2640 = vdwg.mxu0
    %v2641 = vmax.f32 %v2636, 0.0
    %v2642 = vld [vmem:[%s1] sm:$0xff]
    %v2643 = vld [vmem:[%s1 + $0x8] sm:$0xff]
    %v2644 = vld [vmem:[%s1 + $0x10] sm:$0xff]
    %2645 = vadd.xlane.f32.xlu0 %v2641
    %v2646 = vpop.xlane.xlu0 %2645
    %v2647 = vadd.f32 %v2642, %v2643
    %v2648 = vadd.f32 %v2647, %v2644
    %2649 = vadd.xlane.f32.xlu0 %v2648
    %v2650 = vpop.xlane.xlu0 %2649
    %v2651 = vadd.f32 %v2646, %v2650
    %v2652 = vmul.f32 %v2651, 0.002538071
    %v2653 = vsub.f32 %v2641, %v2652
    %v2654 = vsub.f32 %v2642, %v2652
    %v2655 = vsub.f32 %v2643, %v2652
    %v2656 = vsub.f32 %v2644, %v2652
    %v2658 = vlaneseq
    %v2659 = vshrl.u32 %v2658, 7
    %v2660 = vsub.s32 0, %v2659
    %v2661 = vrot.slane %v134, %v2660
    %v2662 = vlaneseq
    %v2663 = vshrl.u32 %v2662, 7
    %v2664 = vsub.s32 1, %v2663
    %v2665 = vrot.slane %v134, %v2664
    %v2666 = vlaneseq
    %v2667 = vshrl.u32 %v2666, 7
    %v2668 = vsub.s32 2, %v2667
    %v2669 = vrot.slane %v134, %v2668
    %v2673 = vmul.f32 %v2654, %v2661
    %v2674 = vmul.f32 %v2655, %v2665
    %v2675 = vmul.f32 %v2656, %v2669
    %v2676 = vmul.f32 %v2653, %v2653
    %2677 = vadd.xlane.f32.xlu0 %v2676
    %v2678 = vpop.xlane.xlu0 %2677
    %v2679 = vmul.f32 %v2673, %v2673
    %v2680 = vmul.f32 %v2674, %v2674
    %v2681 = vmul.f32 %v2675, %v2675
    %v2682 = vadd.f32 %v2679, %v2680
    %v2683 = vadd.f32 %v2682, %v2681
    %2684 = vadd.xlane.f32.xlu0 %v2683
    %v2685 = vpop.xlane.xlu0 %2684
    %v2686 = vadd.f32 %v2678, %v2685
    %v2687 = vmul.f32 %v2686, 0.002538071
    %v2688 = vadd.f32 %v2687, 1e-05
    %v2689 = vrsqrt.pop %v2688
    %v2690 = vmul.f32 %v2653, %v2689
    %v2691 = vlaneseq
    %v2692 = vshrl.u32 %v2691, 7
    %v2693 = vsub.s32 0, %v2692
    %v2694 = vrot.slane %v124, %v2693
    %v2695 = vmul.f32 %v2690, %v2694
    %v2696 = vlaneseq
    %v2697 = vshrl.u32 %v2696, 7
    %v2698 = vsub.s32 0, %v2697
    %v2699 = vrot.slane %v125, %v2698
    %v2700 = vadd.f32 %v2695, %v2699
    %v2701 = vmul.f32 %v2673, %v2689
    %v2702 = vmul.f32 %v2674, %v2689
    %v2703 = vmul.f32 %v2675, %v2689
    %v2705 = vlaneseq
    %v2706 = vshrl.u32 %v2705, 7
    %v2707 = vsub.s32 0, %v2706
    %v2708 = vrot.slane %v130, %v2707
    %v2709 = vlaneseq
    %v2710 = vshrl.u32 %v2709, 7
    %v2711 = vsub.s32 1, %v2710
    %v2712 = vrot.slane %v130, %v2711
    %v2713 = vlaneseq
    %v2714 = vshrl.u32 %v2713, 7
    %v2715 = vsub.s32 2, %v2714
    %v2716 = vrot.slane %v130, %v2715
    %v2720 = vmul.f32 %v2701, %v2708
    %v2721 = vmul.f32 %v2702, %v2712
    %v2722 = vmul.f32 %v2703, %v2716
    %v2724 = vlaneseq
    %v2725 = vshrl.u32 %v2724, 7
    %v2726 = vsub.s32 0, %v2725
    %v2727 = vrot.slane %v132, %v2726
    %v2728 = vlaneseq
    %v2729 = vshrl.u32 %v2728, 7
    %v2730 = vsub.s32 1, %v2729
    %v2731 = vrot.slane %v132, %v2730
    %v2732 = vlaneseq
    %v2733 = vshrl.u32 %v2732, 7
    %v2734 = vsub.s32 2, %v2733
    %v2735 = vrot.slane %v132, %v2734
    %v2739 = vadd.f32 %v2720, %v2727
    %v2740 = vadd.f32 %v2721, %v2731
    %v2741 = vadd.f32 %v2722, %v2735
    %v2742 = vpack.c.bf16 %v2700, %v2700
    %v2743 = vld [vmem:[%s7] sm:$0xf]
    %v2744 = vld [vmem:[%s7 + $0x4] sm:$0xf]
    %v2745 = vld [vmem:[%s7 + $0x8] sm:$0xf]
    %v2746 = vld [vmem:[%s7 + $0xc] sm:$0xf]
    %v2747 = vld [vmem:[%s7 + $0x10] sm:$0xf]
    %v2748 = vld [vmem:[%s7 + $0x14] sm:$0xf]
    %v2749 = vld [vmem:[%s7 + $0x18] sm:$0xf]
    %v2750 = vld [vmem:[%s7 + $0x1c] sm:$0xf]
    %v2751 = vld [vmem:[%s7 + $0x20] sm:$0xf]
    %v2752 = vld [vmem:[%s7 + $0x24] sm:$0xf]
    %v2753 = vld [vmem:[%s7 + $0x28] sm:$0xf]
    %v2754 = vld [vmem:[%s7 + $0x2c] sm:$0xf]
    %v2755 = vld [vmem:[%s7 + $0x30] sm:$0xf]
    %v2756 = vld [vmem:[%s7 + $0x34] sm:$0xf]
    %v2757 = vld [vmem:[%s7 + $0x38] sm:$0xf]
    %v2758 = vld [vmem:[%s7 + $0x3c] sm:$0xf]
    %v2759 = vpack.c.bf16 %v2739, %v2739
    %v2760 = vpack.c.bf16 %v2740, %v2740
    %v2761 = vpack.c.bf16 %v2741, %v2741
    %v2762 = vld [vmem:[#allocation12] sm:$0xf]
    %v2763 = vld [vmem:[#allocation12 + $0x4] sm:$0xf]
    %v2764 = vld [vmem:[#allocation12 + $0x8] sm:$0xf]
    %v2765 = vld [vmem:[#allocation12 + $0xc] sm:$0xf]
    %v2766 = vld [vmem:[#allocation12 + $0x10] sm:$0xf]
    %v2767 = vld [vmem:[#allocation12 + $0x14] sm:$0xf]
    %v2768 = vld [vmem:[#allocation12 + $0x18] sm:$0xf]
    %v2769 = vld [vmem:[#allocation12 + $0x1c] sm:$0xf]
    %v2770 = vld [vmem:[#allocation12 + $0x20] sm:$0xf]
    %v2771 = vld [vmem:[#allocation12 + $0x24] sm:$0xf]
    %v2772 = vld [vmem:[#allocation12 + $0x28] sm:$0xf]
    %v2773 = vld [vmem:[#allocation12 + $0x2c] sm:$0xf]
    %v2774 = vld [vmem:[#allocation12 + $0x30] sm:$0xf]
    %v2775 = vld [vmem:[#allocation12 + $0x34] sm:$0xf]
    %v2776 = vld [vmem:[#allocation12 + $0x38] sm:$0xf]
    %v2777 = vld [vmem:[#allocation12 + $0x3c] sm:$0xf]
    %v2778 = vld [vmem:[#allocation12 + $0x40] sm:$0xf]
    %v2779 = vld [vmem:[#allocation12 + $0x44] sm:$0xf]
    %v2780 = vld [vmem:[#allocation12 + $0x48] sm:$0xf]
    %v2781 = vld [vmem:[#allocation12 + $0x4c] sm:$0xf]
    %v2782 = vld [vmem:[#allocation12 + $0x50] sm:$0xf]
    %v2783 = vld [vmem:[#allocation12 + $0x54] sm:$0xf]
    %v2784 = vld [vmem:[#allocation12 + $0x58] sm:$0xf]
    %v2785 = vld [vmem:[#allocation12 + $0x5c] sm:$0xf]
    %v2786 = vld [vmem:[#allocation12 + $0x60] sm:$0xf]
    %v2787 = vld [vmem:[#allocation12 + $0x64] sm:$0xf]
    %v2788 = vld [vmem:[#allocation12 + $0x68] sm:$0xf]
    %v2789 = vld [vmem:[#allocation12 + $0x6c] sm:$0xf]
    %v2790 = vld [vmem:[#allocation12 + $0x70] sm:$0xf]
    %v2791 = vld [vmem:[#allocation12 + $0x74] sm:$0xf]
    %v2792 = vld [vmem:[#allocation12 + $0x78] sm:$0xf]
    %v2793 = vld [vmem:[#allocation12 + $0x7c] sm:$0xf]
    %v2794 = vld [vmem:[#allocation12 + $0x80] sm:$0xf]
    %v2795 = vld [vmem:[#allocation12 + $0x84] sm:$0xf]
    %v2796 = vld [vmem:[#allocation12 + $0x88] sm:$0xf]
    %v2797 = vld [vmem:[#allocation12 + $0x8c] sm:$0xf]
    %v2798 = vld [vmem:[#allocation12 + $0x90] sm:$0xf]
    %v2799 = vld [vmem:[#allocation12 + $0x94] sm:$0xf]
    %v2800 = vld [vmem:[#allocation12 + $0x98] sm:$0xf]
    %v2801 = vld [vmem:[#allocation12 + $0x9c] sm:$0xf]
    %v2802 = vld [vmem:[#allocation12 + $0xa0] sm:$0xf]
    %v2803 = vld [vmem:[#allocation12 + $0xa4] sm:$0xf]
    %v2804 = vld [vmem:[#allocation12 + $0xa8] sm:$0xf]
    %v2805 = vld [vmem:[#allocation12 + $0xac] sm:$0xf]
    %v2806 = vld [vmem:[#allocation12 + $0xb0] sm:$0xf]
    %v2807 = vld [vmem:[#allocation12 + $0xb4] sm:$0xf]
    %v2808 = vld [vmem:[#allocation12 + $0xb8] sm:$0xf]
    %v2809 = vld [vmem:[#allocation12 + $0xbc] sm:$0xf]
    %v2858 = vunpack.c.l.b16 %v2762
    %v2859 = vunpack.c.l.b16 %v2763
    %v2860 = vunpack.c.l.b16 %v2764
    %v2861 = vunpack.c.l.b16 %v2765
    %v2862 = vunpack.c.l.b16 %v2766
    %v2863 = vunpack.c.l.b16 %v2767
    %v2864 = vunpack.c.l.b16 %v2768
    %v2865 = vunpack.c.l.b16 %v2769
    %v2866 = vunpack.c.l.b16 %v2770
    %v2867 = vunpack.c.l.b16 %v2771
    %v2868 = vunpack.c.l.b16 %v2772
    %v2869 = vunpack.c.l.b16 %v2773
    %v2870 = vunpack.c.l.b16 %v2774
    %v2871 = vunpack.c.l.b16 %v2775
    %v2872 = vunpack.c.l.b16 %v2776
    %v2873 = vunpack.c.l.b16 %v2777
    %v2874 = vunpack.c.l.b16 %v2778
    %v2875 = vunpack.c.l.b16 %v2779
    %v2876 = vunpack.c.l.b16 %v2780
    %v2877 = vunpack.c.l.b16 %v2781
    %v2878 = vunpack.c.l.b16 %v2782
    %v2879 = vunpack.c.l.b16 %v2783
    %v2880 = vunpack.c.l.b16 %v2784
    %v2881 = vunpack.c.l.b16 %v2785
    %v2882 = vunpack.c.l.b16 %v2786
    %v2883 = vunpack.c.l.b16 %v2787
    %v2884 = vunpack.c.l.b16 %v2788
    %v2885 = vunpack.c.l.b16 %v2789
    %v2886 = vunpack.c.l.b16 %v2790
    %v2887 = vunpack.c.l.b16 %v2791
    %v2888 = vunpack.c.l.b16 %v2792
    %v2889 = vunpack.c.l.b16 %v2793
    %v2890 = vunpack.c.l.b16 %v2794
    %v2891 = vunpack.c.l.b16 %v2795
    %v2892 = vunpack.c.l.b16 %v2796
    %v2893 = vunpack.c.l.b16 %v2797
    %v2894 = vunpack.c.l.b16 %v2798
    %v2895 = vunpack.c.l.b16 %v2799
    %v2896 = vunpack.c.l.b16 %v2800
    %v2897 = vunpack.c.l.b16 %v2801
    %v2898 = vunpack.c.l.b16 %v2802
    %v2899 = vunpack.c.l.b16 %v2803
    %v2900 = vunpack.c.l.b16 %v2804
    %v2901 = vunpack.c.l.b16 %v2805
    %v2902 = vunpack.c.l.b16 %v2806
    %v2903 = vunpack.c.l.b16 %v2807
    %v2904 = vunpack.c.l.b16 %v2808
    %v2905 = vunpack.c.l.b16 %v2809
    %v2906 = vpack.c.b16 %v2859, %v2858
    %v2907 = vpack.c.b16 %v2861, %v2860
    %v2908 = vpack.c.b16 %v2863, %v2862
    %v2909 = vpack.c.b16 %v2865, %v2864
    %v2910 = vpack.c.b16 %v2867, %v2866
    %v2911 = vpack.c.b16 %v2869, %v2868
    %v2912 = vpack.c.b16 %v2871, %v2870
    %v2913 = vpack.c.b16 %v2873, %v2872
    %v2914 = vpack.c.b16 %v2875, %v2874
    %v2915 = vpack.c.b16 %v2877, %v2876
    %v2916 = vpack.c.b16 %v2879, %v2878
    %v2917 = vpack.c.b16 %v2881, %v2880
    %v2918 = vpack.c.b16 %v2883, %v2882
    %v2919 = vpack.c.b16 %v2885, %v2884
    %v2920 = vpack.c.b16 %v2887, %v2886
    %v2921 = vpack.c.b16 %v2889, %v2888
    %v2922 = vpack.c.b16 %v2891, %v2890
    %v2923 = vpack.c.b16 %v2893, %v2892
    %v2924 = vpack.c.b16 %v2895, %v2894
    %v2925 = vpack.c.b16 %v2897, %v2896
    %v2926 = vpack.c.b16 %v2899, %v2898
    %v2927 = vpack.c.b16 %v2901, %v2900
    %v2928 = vpack.c.b16 %v2903, %v2902
    %v2929 = vpack.c.b16 %v2905, %v2904
    %2954 = vmatprep.subr.bf16.mxu0 0
    %2955 = vmatpush1.bf16.msra.mxu0 %v2906
    %2956 = vmatprep.subr.bf16.mxu0 0
    %2957 = vmatpush1.bf16.msra.mxu0 %v2907
    %2958 = vmatprep.subr.bf16.mxu0 0
    %2959 = vmatpush1.bf16.msra.mxu0 %v2908
    %2960 = vmatprep.subr.bf16.mxu0 0
    %2961 = vmatpush1.bf16.msra.mxu0 %v2909
    %2962 = vmatprep.subr.bf16.mxu0 0
    %2963 = vmatpush1.bf16.msra.mxu0 %v2910
    %2964 = vmatprep.subr.bf16.mxu0 0
    %2965 = vmatpush1.bf16.msra.mxu0 %v2911
    %2966 = vmatprep.subr.bf16.mxu0 0
    %2967 = vmatpush1.bf16.msra.mxu0 %v2912
    %2968 = vmatprep.subr.bf16.mxu0 0
    %2969 = vmatpush1.bf16.msra.mxu0 %v2913
    %2970 = vmatprep.subr.bf16.mxu0 0
    %2971 = vmatpush1.bf16.msra.mxu0 %v2914
    %2972 = vmatprep.subr.bf16.mxu0 0
    %2973 = vmatpush1.bf16.msra.mxu0 %v2915
    %2974 = vmatprep.subr.bf16.mxu0 0
    %2975 = vmatpush1.bf16.msra.mxu0 %v2916
    %2976 = vmatprep.subr.bf16.mxu0 0
    %2977 = vmatpush1.bf16.msra.mxu0 %v2917
    %2978 = vmatprep.subr.bf16.mxu0 0
    %2979 = vmatpush1.bf16.msra.mxu0 %v2918
    %2980 = vmatprep.subr.bf16.mxu0 0
    %2981 = vmatpush1.bf16.msra.mxu0 %v2919
    %2982 = vmatprep.subr.bf16.mxu0 0
    %2983 = vmatpush1.bf16.msra.mxu0 %v2920
    %2984 = vmatprep.subr.bf16.mxu0 0
    %2985 = vmatpush1.bf16.msra.mxu0 %v2921
    %2986 = vmatprep.mubr.bf16.mxu0 %v2760
    %2987 = vmatmul.mubr.bf16.gmra.mrb[0].mxu0 %v2759
    %v2988 = vpop.f32.mrb[0].mxu0
    %v2989 = vadd.f32 0.0, %v2988
    %v2990 = vpop.f32.mrb[0].mxu0
    %v2991 = vpop.f32.mrb[0].mxu0
    %v2992 = vpop.f32.mrb[0].mxu0
    %2993 = vdwg.mxu0
    %2994 = vmatprep.subr.bf16.mxu0 0
    %2995 = vmatpush1.bf16.msra.mxu0 %v2922
    %2996 = vmatprep.subr.bf16.mxu0 0
    %2997 = vmatpush1.bf16.msra.mxu0 %v2923
    %2998 = vmatprep.subr.bf16.mxu0 0
    %2999 = vmatpush1.bf16.msra.mxu0 %v2924
    %3000 = vmatprep.subr.bf16.mxu0 0
    %3001 = vmatpush1.bf16.msra.mxu0 %v2925
    %3002 = vmatprep.subr.bf16.mxu0 0
    %3003 = vmatpush1.bf16.msra.mxu0 %v2926
    %3004 = vmatprep.subr.bf16.mxu0 0
    %3005 = vmatpush1.bf16.msra.mxu0 %v2927
    %3006 = vmatprep.subr.bf16.mxu0 0
    %3007 = vmatpush1.bf16.msra.mxu0 %v2928
    %3008 = vmatprep.subr.bf16.mxu0 0
    %3009 = vmatpush1.bf16.msra.mxu0 %v2929
    %3010 = vmatprep.subr.bf16.mxu0 0
    %3011 = vmatpush1.bf16.msra.mxu0 0
    %3012 = vmatprep.subr.bf16.mxu0 0
    %3013 = vmatpush1.bf16.msra.mxu0 0
    %3014 = vmatprep.subr.bf16.mxu0 0
    %3015 = vmatpush1.bf16.msra.mxu0 0
    %3016 = vmatprep.subr.bf16.mxu0 0
    %3017 = vmatpush1.bf16.msra.mxu0 0
    %3018 = vmatprep.subr.bf16.mxu0 0
    %3019 = vmatpush1.bf16.msra.mxu0 0
    %3020 = vmatprep.subr.bf16.mxu0 0
    %3021 = vmatpush1.bf16.msra.mxu0 0
    %3022 = vmatprep.subr.bf16.mxu0 0
    %3023 = vmatpush1.bf16.msra.mxu0 0
    %3024 = vmatprep.subr.bf16.mxu0 0
    %3025 = vmatpush1.bf16.msra.mxu0 0
    %3026 = vmatprep.mubr.bf16.mxu0 0
    %3027 = vmatmul.mubr.bf16.gmra.mrb[0].mxu0 %v2761
    %v3028 = vpop.f32.mrb[0].mxu0
    %v3029 = vadd.f32 %v2989, %v3028
    %v3030 = vpop.f32.mrb[0].mxu0
    %v3031 = vpop.f32.mrb[0].mxu0
    %v3032 = vpop.f32.mrb[0].mxu0
    %3033 = vdwg.mxu0
    %v3050 = vunpack.c.l.b16 %v2743
    %v3051 = vunpack.c.l.b16 %v2744
    %v3052 = vunpack.c.l.b16 %v2745
    %v3053 = vunpack.c.l.b16 %v2746
    %v3054 = vunpack.c.l.b16 %v2747
    %v3055 = vunpack.c.l.b16 %v2748
    %v3056 = vunpack.c.l.b16 %v2749
    %v3057 = vunpack.c.l.b16 %v2750
    %v3058 = vunpack.c.l.b16 %v2751
    %v3059 = vunpack.c.l.b16 %v2752
    %v3060 = vunpack.c.l.b16 %v2753
    %v3061 = vunpack.c.l.b16 %v2754
    %v3062 = vunpack.c.l.b16 %v2755
    %v3063 = vunpack.c.l.b16 %v2756
    %v3064 = vunpack.c.l.b16 %v2757
    %v3065 = vunpack.c.l.b16 %v2758
    %v3066 = vpack.c.b16 %v3051, %v3050
    %v3067 = vpack.c.b16 %v3053, %v3052
    %v3068 = vpack.c.b16 %v3055, %v3054
    %v3069 = vpack.c.b16 %v3057, %v3056
    %v3070 = vpack.c.b16 %v3059, %v3058
    %v3071 = vpack.c.b16 %v3061, %v3060
    %v3072 = vpack.c.b16 %v3063, %v3062
    %v3073 = vpack.c.b16 %v3065, %v3064
    %3082 = vmatprep.subr.bf16.mxu0 0
    %3083 = vmatpush1.bf16.msra.mxu0 %v3066
    %3084 = vmatprep.subr.bf16.mxu0 0
    %3085 = vmatpush1.bf16.msra.mxu0 %v3067
    %3086 = vmatprep.subr.bf16.mxu0 0
    %3087 = vmatpush1.bf16.msra.mxu0 %v3068
    %3088 = vmatprep.subr.bf16.mxu0 0
    %3089 = vmatpush1.bf16.msra.mxu0 %v3069
    %3090 = vmatprep.subr.bf16.mxu0 0
    %3091 = vmatpush1.bf16.msra.mxu0 %v3070
    %3092 = vmatprep.subr.bf16.mxu0 0
    %3093 = vmatpush1.bf16.msra.mxu0 %v3071
    %3094 = vmatprep.subr.bf16.mxu0 0
    %3095 = vmatpush1.bf16.msra.mxu0 %v3072
    %3096 = vmatprep.subr.bf16.mxu0 0
    %3097 = vmatpush1.bf16.msra.mxu0 %v3073
    %3098 = vmatprep.subr.bf16.mxu0 0
    %3099 = vmatpush1.bf16.msra.mxu0 0
    %3100 = vmatprep.subr.bf16.mxu0 0
    %3101 = vmatpush1.bf16.msra.mxu0 0
    %3102 = vmatprep.subr.bf16.mxu0 0
    %3103 = vmatpush1.bf16.msra.mxu0 0
    %3104 = vmatprep.subr.bf16.mxu0 0
    %3105 = vmatpush1.bf16.msra.mxu0 0
    %3106 = vmatprep.subr.bf16.mxu0 0
    %3107 = vmatpush1.bf16.msra.mxu0 0
    %3108 = vmatprep.subr.bf16.mxu0 0
    %3109 = vmatpush1.bf16.msra.mxu0 0
    %3110 = vmatprep.subr.bf16.mxu0 0
    %3111 = vmatpush1.bf16.msra.mxu0 0
    %3112 = vmatprep.subr.bf16.mxu0 0
    %3113 = vmatpush1.bf16.msra.mxu0 0
    %3114 = vmatprep.mubr.bf16.mxu0 0
    %3115 = vmatmul.mubr.bf16.gmra.mrb[0].mxu0 %v2742
    %v3116 = vpop.f32.mrb[0].mxu0
    %v3117 = vadd.f32 %v3029, %v3116
    %v3118 = vpop.f32.mrb[0].mxu0
    %v3119 = vpop.f32.mrb[0].mxu0
    %v3120 = vpop.f32.mrb[0].mxu0
    %3121 = vdwg.mxu0
    %v3122 = vlaneseq
    %v3123 = vshrl.u32 %v3122, 7
    %v3124 = vsub.s32 0, %v3123
    %v3125 = vrot.slane %v126, %v3124
    %v3126 = vadd.f32 %v3117, %v3125
    %v3127 = vmax.f32 %v3126, 0.0
    %v3128 = vpack.c.bf16 %v3127, %v3127
    %v3129 = vld [vmem:[%s9] sm:$0xf]
    %v3130 = vld [vmem:[%s9 + $0x4] sm:$0xf]
    %v3131 = vld [vmem:[%s9 + $0x8] sm:$0xf]
    %v3132 = vld [vmem:[%s9 + $0xc] sm:$0xf]
    %v3133 = vld [vmem:[%s9 + $0x10] sm:$0xf]
    %v3134 = vld [vmem:[%s9 + $0x14] sm:$0xf]
    %v3135 = vld [vmem:[%s9 + $0x18] sm:$0xf]
    %v3136 = vld [vmem:[%s9 + $0x1c] sm:$0xf]
    %v3137 = vld [vmem:[%s9 + $0x20] sm:$0xf]
    %v3138 = vld [vmem:[%s9 + $0x24] sm:$0xf]
    %v3139 = vld [vmem:[%s9 + $0x28] sm:$0xf]
    %v3140 = vld [vmem:[%s9 + $0x2c] sm:$0xf]
    %v3141 = vld [vmem:[%s9 + $0x30] sm:$0xf]
    %v3142 = vld [vmem:[%s9 + $0x34] sm:$0xf]
    %v3143 = vld [vmem:[%s9 + $0x38] sm:$0xf]
    %v3144 = vld [vmem:[%s9 + $0x3c] sm:$0xf]
    %v3145 = vlaneseq
    %v3146 = vshrl.u32 %v3145, 7
    %v3147 = vsub.s32 0, %v3146
    %v3148 = vrot.slane %v127, %v3147
    %v3165 = vunpack.c.l.b16 %v3129
    %v3166 = vunpack.c.l.b16 %v3130
    %v3167 = vunpack.c.l.b16 %v3131
    %v3168 = vunpack.c.l.b16 %v3132
    %v3169 = vunpack.c.l.b16 %v3133
    %v3170 = vunpack.c.l.b16 %v3134
    %v3171 = vunpack.c.l.b16 %v3135
    %v3172 = vunpack.c.l.b16 %v3136
    %v3173 = vunpack.c.l.b16 %v3137
    %v3174 = vunpack.c.l.b16 %v3138
    %v3175 = vunpack.c.l.b16 %v3139
    %v3176 = vunpack.c.l.b16 %v3140
    %v3177 = vunpack.c.l.b16 %v3141
    %v3178 = vunpack.c.l.b16 %v3142
    %v3179 = vunpack.c.l.b16 %v3143
    %v3180 = vunpack.c.l.b16 %v3144
    %v3181 = vpack.c.b16 %v3166, %v3165
    %v3182 = vpack.c.b16 %v3168, %v3167
    %v3183 = vpack.c.b16 %v3170, %v3169
    %v3184 = vpack.c.b16 %v3172, %v3171
    %v3185 = vpack.c.b16 %v3174, %v3173
    %v3186 = vpack.c.b16 %v3176, %v3175
    %v3187 = vpack.c.b16 %v3178, %v3177
    %v3188 = vpack.c.b16 %v3180, %v3179
    %3197 = vmatprep.subr.bf16.mxu0 0
    %3198 = vmatpush1.bf16.msra.mxu0 %v3181
    %3199 = vmatprep.subr.bf16.mxu0 0
    %3200 = vmatpush1.bf16.msra.mxu0 %v3182
    %3201 = vmatprep.subr.bf16.mxu0 0
    %3202 = vmatpush1.bf16.msra.mxu0 %v3183
    %3203 = vmatprep.subr.bf16.mxu0 0
    %3204 = vmatpush1.bf16.msra.mxu0 %v3184
    %3205 = vmatprep.subr.bf16.mxu0 0
    %3206 = vmatpush1.bf16.msra.mxu0 %v3185
    %3207 = vmatprep.subr.bf16.mxu0 0
    %3208 = vmatpush1.bf16.msra.mxu0 %v3186
    %3209 = vmatprep.subr.bf16.mxu0 0
    %3210 = vmatpush1.bf16.msra.mxu0 %v3187
    %3211 = vmatprep.subr.bf16.mxu0 0
    %3212 = vmatpush1.bf16.msra.mxu0 %v3188
    %3213 = vmatprep.subr.bf16.mxu0 0
    %3214 = vmatpush1.bf16.msra.mxu0 0
    %3215 = vmatprep.subr.bf16.mxu0 0
    %3216 = vmatpush1.bf16.msra.mxu0 0
    %3217 = vmatprep.subr.bf16.mxu0 0
    %3218 = vmatpush1.bf16.msra.mxu0 0
    %3219 = vmatprep.subr.bf16.mxu0 0
    %3220 = vmatpush1.bf16.msra.mxu0 0
    %3221 = vmatprep.subr.bf16.mxu0 0
    %3222 = vmatpush1.bf16.msra.mxu0 0
    %3223 = vmatprep.subr.bf16.mxu0 0
    %3224 = vmatpush1.bf16.msra.mxu0 0
    %3225 = vmatprep.subr.bf16.mxu0 0
    %3226 = vmatpush1.bf16.msra.mxu0 0
    %3227 = vmatprep.subr.bf16.mxu0 0
    %3228 = vmatpush1.bf16.msra.mxu0 0
    %3229 = vmatprep.mubr.bf16.mxu0 0
    %3230 = vmatmul.mubr.bf16.gmra.mrb[0].mxu0 %v3128
    %v3231 = vpop.f32.mrb[0].mxu0
    %v3232 = vadd.f32 %v3148, %v3231
    %v3233 = vpop.f32.mrb[0].mxu0
    %v3234 = vpop.f32.mrb[0].mxu0
    %v3235 = vpop.f32.mrb[0].mxu0
    %3236 = vdwg.mxu0
    %v3237 = vmax.f32 %v3232, 0.0
    %v3238 = vlaneseq
    %v3239 = vshrl.u32 %v3238, 7
    %v3240 = vsub.s32 0, %v3239
    %v3241 = vrot.slane %v128, %v3240
    %v3242 = vmul.f32 %v3237, %v3241
    %vm3243 = vcmask 261120
    %v3244 = vsel %vm3243, %v3242, 0.0
    %3245 = vadd.xlane.f32.xlu0 %v3244
    %v3246 = vpop.xlane.xlu0 %3245
    %v3247 = vlaneseq
    %v3248 = vshrl.u32 %v3247, 7
    %v3249 = vsub.s32 0, %v3248
    %v3250 = vrot.slane %v129, %v3249
    %v3251 = vadd.f32 %v3246, %v3250
    %vm3252 = vcmask 7168
    %3253 = vst.msk [vmem:[%s10] sm:$0xff] %vm3252, %v3251
    // Predicated region
    $region70: #{tpu_custom_call.1} parent=1 // pred_check
      _
    $region71: #{tpu_custom_call.1} parent=1 // pred_check_branch
      %3255 = sbr.rel (0) target = $region73
    $region72: #{tpu_custom_call.1} parent=1 // pred_region
      _
    $region73: #{tpu_custom_call.1} parent=1 // pred_fallthru
      _
    // Predicated region
    $region74: #{tpu_custom_call.1} parent=1 // pred_check
      _
    $region75: #{tpu_custom_call.1} parent=1 // pred_check_branch
      %3257 = sbr.rel (0) target = $region77
    $region76: #{tpu_custom_call.1} parent=1 // pred_region
      _
    $region77: #{tpu_custom_call.1} parent=1 // pred_fallthru
      _
    %3258 = vsyncpa [#allocation3], 1
    %3259 = vsyncpa [#allocation5], 1
    %3260 = vsyncpa [#allocation8], 1
    %3261 = vsyncpa [#allocation11], 1

</llo_original>
